<compile_context>
chip_gen: v6e
topology: v6e:2x2x1
jax: 0.10.0
libtpu: 0.0.40
codegen_flags: <defaults>
</compile_context>

<pallas_src>
import functools

import jax
import jax.numpy as jnp
import numpy as np
from jax.experimental import pallas as pl
from jax.experimental.pallas import tpu as pltpu

_LANE = 128


def _round_up(x, m):
    return ((x + m - 1) // m) * m


def _vmem_limit_bytes():
    """Explicit scoped-VMEM limit: ~100 MiB on v5e/v6e (128 MiB phys),
    ~56 MiB on v7x (64 MiB phys)."""
    try:
        phys = pltpu.get_tpu_info().vmem_capacity_bytes
    except Exception:
        phys = 64 << 20  # conservative (v7x-sized) fallback
    return min(100 << 20, int(phys) * 7 // 8)


def _pick_batch_block(batch):
    """Largest divisor of `batch` that still leaves a grid of length >= 2
    (keep both v7x TensorCores busy) while amortizing per-step overhead."""
    if batch <= 1:
        return max(batch, 1)
    for bb in range(batch // 2, 0, -1):
        if batch % bb == 0:
            return bb
    return 1


# ---------------------------------------------------------------------------
# Fused Pallas kernel: full RGCN forward for `batch_block` elements per step.
# ---------------------------------------------------------------------------
def _rgcn_fused_kernel(*refs, edge_dim, relus, pad, n_nodes, batch_block):
    # refs = (x_ref, adj_ref, w_ref_0, ..., w_ref_{L-1}, o_ref)
    x_ref, adj_ref = refs[0], refs[1]
    w_refs = refs[2:-1]
    o_ref = refs[-1]
    N, BB = n_nodes, batch_block

    # (BB, N, Din0) -> (BB*N, Din0): free leading-dim (sublane) merge.
    h = x_ref[...].reshape(BB * N, x_ref.shape[-1]).astype(jnp.float32)

    for w_ref, relu in zip(w_refs, relus):
        # Support for ALL relations and ALL batch elements of this block in one
        # MXU push: (BB*N, Din) @ (Din, E*pad), bf16 operands, f32 accumulation.
        support = jnp.dot(
            h.astype(jnp.bfloat16), w_ref[...], preferred_element_type=jnp.float32
        )  # (BB*N, E*pad)

        outs = []
        for b in range(BB):  # BB, E small & static -> unrolled
            # Sublane-aligned slice when N % 8 == 0 (true for the demo shapes).
            sup_b = support[b * N:(b + 1) * N]
            acc = None
            for e in range(edge_dim):
                sup_e = sup_b[:, e * pad:(e + 1) * pad]      # 128-lane aligned
                out_e = jnp.dot(
                    adj_ref[b, e],                            # bf16, exact for {0,1}
                    sup_e.astype(jnp.bfloat16),
                    preferred_element_type=jnp.float32,
                )
                if relu:
                    out_e = jnp.maximum(out_e, 0.0)           # per-relation ReLU
                acc = out_e if acc is None else acc + out_e   # no zeros-init
            outs.append(acc)
        h = outs[0] if BB == 1 else jnp.concatenate(outs, axis=0)  # (BB*N, pad)

    # Lane-dense padded store; wrapper slices [:, :, :nout] outside the kernel.
    o_ref[...] = h.reshape(BB, N, pad).astype(o_ref.dtype)


# ---------------------------------------------------------------------------
# One-time weight preprocessing (do this OUTSIDE the jitted per-call forward)
# ---------------------------------------------------------------------------
def _pack_weight(w, din_pad, dout_pad, dtype=jnp.bfloat16):
    """(E, Din, Dout) -> (din_pad, E*dout_pad), zero-padded, so that
    h @ W_all yields all per-relation supports side by side on lanes."""
    E, Din, Dout = w.shape
    wp = jnp.zeros((E, din_pad, dout_pad), jnp.float32)
    wp = wp.at[:, :Din, :Dout].set(w)
    return jnp.transpose(wp, (1, 0, 2)).reshape(din_pad, E * dout_pad).astype(dtype)


def pack_rgcn_params(params):
    """Fold the input embedding Linear into gc1 (exact: no nonlinearity between
    them) and pack per-relation weights into lane-padded bf16 slabs.  Call once."""
    nfeat = params["emb_wt"].shape[0]
    nhid = params["gc1"].shape[2]
    nout = params["gc3"].shape[2]
    pad = _round_up(max(nhid, nout), _LANE)

    w1 = jnp.einsum("df,efh->edh", params["emb_wt"], params["gc1"],
                    precision=jax.lax.Precision.HIGHEST)

    packed = [_pack_weight(w1, nfeat, pad)]
    relus = [True]
    for w in params["gc2"]:
        packed.append(_pack_weight(w, pad, pad))
        relus.append(True)
    packed.append(_pack_weight(params["gc3"], pad, pad))
    relus.append(False)

    meta = dict(relus=tuple(relus), pad=pad, nout=nout)
    return tuple(packed), meta


# ---------------------------------------------------------------------------
# Forward wrapper
# ---------------------------------------------------------------------------
def rgcn_forward(packed_weights, meta, x, adj, *, batch_block=None):
    B, N, nfeat = x.shape
    E = adj.shape[1]
    pad, nout, relus = meta["pad"], meta["nout"], meta["relus"]

    BB = batch_block or _pick_batch_block(B)
    assert B % BB == 0, (B, BB)

    # bf16 adjacency: bit-exact for {0,1} entries, halves DMA bytes and VMEM.
    adj_bf16 = adj.astype(jnp.bfloat16)

    kernel = functools.partial(
        _rgcn_fused_kernel, edge_dim=E, relus=relus, pad=pad,
        n_nodes=N, batch_block=BB,
    )

    # Constant-index weight slabs: single-buffered (never re-fetched after step 0).
    def _const_weight_spec(shape):
        try:
            return pl.BlockSpec(shape, lambda b: (0, 0),
                                pipeline_mode=pl.Buffered(1))
        except TypeError:  # older BlockSpec signature without pipeline_mode
            return pl.BlockSpec(shape, lambda b: (0, 0))

    in_specs = [
        pl.BlockSpec((BB, N, nfeat), lambda b: (b, 0, 0)),
        pl.BlockSpec((BB, E, N, N), lambda b: (b, 0, 0, 0)),
    ] + [_const_weight_spec(w.shape) for w in packed_weights]

    out_padded = pl.pallas_call(
        kernel,
        out_shape=jax.ShapeDtypeStruct((B, N, pad), x.dtype),
        grid_spec=pltpu.PrefetchScalarGridSpec(
            num_scalar_prefetch=0,
            grid=(B // BB,),
            in_specs=in_specs,
            out_specs=pl.BlockSpec((BB, N, pad), lambda b: (b, 0, 0)),
        ),
        compiler_params=pltpu.CompilerParams(
            dimension_semantics=("parallel",),
            vmem_limit_bytes=_vmem_limit_bytes(),
        ),
    )(x, adj_bf16, *packed_weights)

    return out_padded[..., :nout]


# ---------------------------------------------------------------------------
# Parameter init (deterministic, xavier-uniform like the PyTorch module)
# ---------------------------------------------------------------------------
def _xavier_uniform(key, shape, fan_in, fan_out):
    bound = float(np.sqrt(6.0 / (fan_in + fan_out)))
    return jax.random.uniform(key, shape, jnp.float32, -bound, bound)


def init_rgcn_params(key, nfeat, nhid, nout, edge_dim, num_layers):
    keys = jax.random.split(key, num_layers + 1)
    params = {}
    # emb = Linear(nfeat, nfeat, bias=False); torch weight is (out, in), y = x @ W.T.
    w_emb = _xavier_uniform(keys[0], (nfeat, nfeat), nfeat, nfeat)
    params["emb_wt"] = w_emb.T  # stored transposed so math is x @ emb_wt
    # R-GCN weights: (edge_dim, in, out); torch 3D xavier fans:
    # fan_in = in * out, fan_out = edge_dim * out.
    params["gc1"] = _xavier_uniform(
        keys[1], (edge_dim, nfeat, nhid), nfeat * nhid, edge_dim * nhid
    )
    params["gc2"] = [
        _xavier_uniform(
            keys[2 + i], (edge_dim, nhid, nhid), nhid * nhid, edge_dim * nhid
        )
        for i in range(num_layers - 2)
    ]
    params["gc3"] = _xavier_uniform(
        keys[num_layers], (edge_dim, nhid, nout), nhid * nout, edge_dim * nout
    )
    return params


# ---------------------------------------------------------------------------
# Pure-JAX reference (faithful to the PyTorch module structure, HIGHEST prec.)
# ---------------------------------------------------------------------------
def rgcn_reference(params, x, adj):
    prec = jax.lax.Precision.HIGHEST
    x = jnp.einsum("bnd,df->bnf", x, params["emb_wt"], precision=prec)

    def layer(x, w, relu):
        support = jnp.einsum("bid,edh->beih", x, w, precision=prec)
        out = jnp.einsum("beij,bejh->beih", adj, support, precision=prec)
        if relu:
            out = jnp.maximum(out, 0.0)
        return jnp.sum(out, axis=1)

    x = layer(x, params["gc1"], True)
    for w in params["gc2"]:
        x = layer(x, w, True)
    x = layer(x, params["gc3"], False)
    return x


# ---------------------------------------------------------------------------
if __name__ == "__main__":
    # Small shapes consistent with the module's forward signature:
    # x: (batch, N, nfeat), adj: (batch, edge_dim, N, N)
    B, N = 4, 8
    nfeat, nhid, nout = 16, 32, 32
    edge_dim, num_layers = 3, 3

    key = jax.random.PRNGKey(0)
    k_param, k_x, k_adj = jax.random.split(key, 3)

    params = init_rgcn_params(k_param, nfeat, nhid, nout, edge_dim, num_layers)
    x = jax.random.normal(k_x, (B, N, nfeat), dtype=jnp.float32)
    adj = (jax.random.uniform(k_adj, (B, edge_dim, N, N)) > 0.5).astype(jnp.float32)

    # TODO(synk): dropout is a no-op here (p=0.0 / eval mode); only the 'sum'
    # aggregate (the one RGCN uses) is implemented.
    packed, meta = pack_rgcn_params(params)  # one-time, outside the jitted forward

    fwd = jax.jit(lambda pw, xx, aa: rgcn_forward(pw, meta, xx, aa))
    out = jax.block_until_ready(fwd(packed, x, adj))
    ref = jax.block_until_ready(rgcn_reference(params, x, adj))

    assert out.shape == (B, N, nout), out.shape
    # Kernel matmuls use bf16 MXU operands (f32 accumulation) vs the
    # HIGHEST-precision f32 reference -> relaxed tolerance.
    np.testing.assert_allclose(np.asarray(out), np.asarray(ref), rtol=2e-2, atol=2e-2)
    print("KERNEL_OK")
</pallas_src>

<mosaic_0001>
module attributes {stable_mosaic.version = 11 : i64} {
  func.func @_rgcn_fused_kernel(%arg0: i32, %arg1: memref<2x8x16xf32, #tpu.memory_space<vmem>>, %arg2: memref<2x3x8x8xbf16, #tpu.memory_space<vmem>>, %arg3: memref<16x384xbf16, #tpu.memory_space<vmem>>, %arg4: memref<128x384xbf16, #tpu.memory_space<vmem>>, %arg5: memref<128x384xbf16, #tpu.memory_space<vmem>>, %arg6: memref<2x8x128xf32, #tpu.memory_space<vmem>>) attributes {dimension_semantics = [#tpu.dimension_semantics<parallel>], iteration_bounds = array<i64: 2>, scalar_prefetch = 0 : i64, scratch_operands = 0 : i64, tpu.core_type = #tpu.core_type<tc>, window_params = [{transform_indices = @transform_0, window_bounds = array<i64: 2, 8, 16>}, {transform_indices = @transform_1, window_bounds = array<i64: 2, 3, 8, 8>}, {pipeline_mode = #tpu.pipeline_mode<synchronous>, transform_indices = @transform_2, window_bounds = array<i64: 16, 384>}, {pipeline_mode = #tpu.pipeline_mode<synchronous>, transform_indices = @transform_3, window_bounds = array<i64: 128, 384>}, {pipeline_mode = #tpu.pipeline_mode<synchronous>, transform_indices = @transform_4, window_bounds = array<i64: 128, 384>}, {transform_indices = @transform_5, window_bounds = array<i64: 2, 8, 128>}]} {
    %c0 = arith.constant 0 : index
    %c0_0 = arith.constant 0 : index
    %c0_1 = arith.constant 0 : index
    %0 = vector.load %arg1[%c0, %c0_0, %c0_1] : memref<2x8x16xf32, #tpu.memory_space<vmem>>, vector<2x8x16xf32>
    %1 = vector.shape_cast %0 : vector<2x8x16xf32> to vector<16x16xf32>
    %2 = arith.truncf %1 : vector<16x16xf32> to vector<16x16xbf16>
    %c0_2 = arith.constant 0 : index
    %c0_3 = arith.constant 0 : index
    %3 = vector.load %arg3[%c0_2, %c0_3] : memref<16x384xbf16, #tpu.memory_space<vmem>>, vector<16x384xbf16>
    %cst = arith.constant dense<0.000000e+00> : vector<16x384xf32>
    %4 = tpu.matmul %2, %3, %cst {dimension_numbers = #tpu.dot_dimension_numbers<[1], [0], [0], [1], [0, 0, 1, 1], [], []>} : vector<16x16xbf16>, vector<16x384xbf16>, vector<16x384xf32> -> vector<16x384xf32>
    %5 = vector.extract_strided_slice %4 {offsets = [0, 0], sizes = [8, 384], strides = [1, 1]} : vector<16x384xf32> to vector<8x384xf32>
    %6 = vector.extract_strided_slice %5 {offsets = [0, 0], sizes = [8, 128], strides = [1, 1]} : vector<8x384xf32> to vector<8x128xf32>
    %c0_4 = arith.constant 0 : index
    %c0_5 = arith.constant 0 : index
    %c0_6 = arith.constant 0 : index
    %c0_7 = arith.constant 0 : index
    %7 = vector.load %arg2[%c0_4, %c0_5, %c0_6, %c0_7] : memref<2x3x8x8xbf16, #tpu.memory_space<vmem>>, vector<1x1x8x8xbf16>
    %8 = vector.shape_cast %7 : vector<1x1x8x8xbf16> to vector<8x8xbf16>
    %9 = arith.truncf %6 : vector<8x128xf32> to vector<8x128xbf16>
    %cst_8 = arith.constant dense<0.000000e+00> : vector<8x128xf32>
    %10 = tpu.matmul %8, %9, %cst_8 {dimension_numbers = #tpu.dot_dimension_numbers<[1], [0], [0], [1], [0, 0, 1, 1], [], []>} : vector<8x8xbf16>, vector<8x128xbf16>, vector<8x128xf32> -> vector<8x128xf32>
    %cst_9 = arith.constant 0.000000e+00 : f32
    %11 = vector.broadcast %cst_9 : f32 to vector<8x128xf32>
    %12 = arith.maximumf %10, %11 : vector<8x128xf32>
    %13 = vector.extract_strided_slice %5 {offsets = [0, 128], sizes = [8, 128], strides = [1, 1]} : vector<8x384xf32> to vector<8x128xf32>
    %c0_10 = arith.constant 0 : index
    %c1 = arith.constant 1 : index
    %c0_11 = arith.constant 0 : index
    %c0_12 = arith.constant 0 : index
    %14 = vector.load %arg2[%c0_10, %c1, %c0_11, %c0_12] : memref<2x3x8x8xbf16, #tpu.memory_space<vmem>>, vector<1x1x8x8xbf16>
    %15 = vector.shape_cast %14 : vector<1x1x8x8xbf16> to vector<8x8xbf16>
    %16 = arith.truncf %13 : vector<8x128xf32> to vector<8x128xbf16>
    %cst_13 = arith.constant dense<0.000000e+00> : vector<8x128xf32>
    %17 = tpu.matmul %15, %16, %cst_13 {dimension_numbers = #tpu.dot_dimension_numbers<[1], [0], [0], [1], [0, 0, 1, 1], [], []>} : vector<8x8xbf16>, vector<8x128xbf16>, vector<8x128xf32> -> vector<8x128xf32>
    %cst_14 = arith.constant 0.000000e+00 : f32
    %18 = vector.broadcast %cst_14 : f32 to vector<8x128xf32>
    %19 = arith.maximumf %17, %18 : vector<8x128xf32>
    %20 = arith.addf %12, %19 : vector<8x128xf32>
    %21 = vector.extract_strided_slice %5 {offsets = [0, 256], sizes = [8, 128], strides = [1, 1]} : vector<8x384xf32> to vector<8x128xf32>
    %c0_15 = arith.constant 0 : index
    %c2 = arith.constant 2 : index
    %c0_16 = arith.constant 0 : index
    %c0_17 = arith.constant 0 : index
    %22 = vector.load %arg2[%c0_15, %c2, %c0_16, %c0_17] : memref<2x3x8x8xbf16, #tpu.memory_space<vmem>>, vector<1x1x8x8xbf16>
    %23 = vector.shape_cast %22 : vector<1x1x8x8xbf16> to vector<8x8xbf16>
    %24 = arith.truncf %21 : vector<8x128xf32> to vector<8x128xbf16>
    %cst_18 = arith.constant dense<0.000000e+00> : vector<8x128xf32>
    %25 = tpu.matmul %23, %24, %cst_18 {dimension_numbers = #tpu.dot_dimension_numbers<[1], [0], [0], [1], [0, 0, 1, 1], [], []>} : vector<8x8xbf16>, vector<8x128xbf16>, vector<8x128xf32> -> vector<8x128xf32>
    %cst_19 = arith.constant 0.000000e+00 : f32
    %26 = vector.broadcast %cst_19 : f32 to vector<8x128xf32>
    %27 = arith.maximumf %25, %26 : vector<8x128xf32>
    %28 = arith.addf %20, %27 : vector<8x128xf32>
    %29 = vector.extract_strided_slice %4 {offsets = [8, 0], sizes = [8, 384], strides = [1, 1]} : vector<16x384xf32> to vector<8x384xf32>
    %30 = vector.extract_strided_slice %29 {offsets = [0, 0], sizes = [8, 128], strides = [1, 1]} : vector<8x384xf32> to vector<8x128xf32>
    %c1_20 = arith.constant 1 : index
    %c0_21 = arith.constant 0 : index
    %c0_22 = arith.constant 0 : index
    %c0_23 = arith.constant 0 : index
    %31 = vector.load %arg2[%c1_20, %c0_21, %c0_22, %c0_23] : memref<2x3x8x8xbf16, #tpu.memory_space<vmem>>, vector<1x1x8x8xbf16>
    %32 = vector.shape_cast %31 : vector<1x1x8x8xbf16> to vector<8x8xbf16>
    %33 = arith.truncf %30 : vector<8x128xf32> to vector<8x128xbf16>
    %cst_24 = arith.constant dense<0.000000e+00> : vector<8x128xf32>
    %34 = tpu.matmul %32, %33, %cst_24 {dimension_numbers = #tpu.dot_dimension_numbers<[1], [0], [0], [1], [0, 0, 1, 1], [], []>} : vector<8x8xbf16>, vector<8x128xbf16>, vector<8x128xf32> -> vector<8x128xf32>
    %cst_25 = arith.constant 0.000000e+00 : f32
    %35 = vector.broadcast %cst_25 : f32 to vector<8x128xf32>
    %36 = arith.maximumf %34, %35 : vector<8x128xf32>
    %37 = vector.extract_strided_slice %29 {offsets = [0, 128], sizes = [8, 128], strides = [1, 1]} : vector<8x384xf32> to vector<8x128xf32>
    %c1_26 = arith.constant 1 : index
    %c1_27 = arith.constant 1 : index
    %c0_28 = arith.constant 0 : index
    %c0_29 = arith.constant 0 : index
    %38 = vector.load %arg2[%c1_26, %c1_27, %c0_28, %c0_29] : memref<2x3x8x8xbf16, #tpu.memory_space<vmem>>, vector<1x1x8x8xbf16>
    %39 = vector.shape_cast %38 : vector<1x1x8x8xbf16> to vector<8x8xbf16>
    %40 = arith.truncf %37 : vector<8x128xf32> to vector<8x128xbf16>
    %cst_30 = arith.constant dense<0.000000e+00> : vector<8x128xf32>
    %41 = tpu.matmul %39, %40, %cst_30 {dimension_numbers = #tpu.dot_dimension_numbers<[1], [0], [0], [1], [0, 0, 1, 1], [], []>} : vector<8x8xbf16>, vector<8x128xbf16>, vector<8x128xf32> -> vector<8x128xf32>
    %cst_31 = arith.constant 0.000000e+00 : f32
    %42 = vector.broadcast %cst_31 : f32 to vector<8x128xf32>
    %43 = arith.maximumf %41, %42 : vector<8x128xf32>
    %44 = arith.addf %36, %43 : vector<8x128xf32>
    %45 = vector.extract_strided_slice %29 {offsets = [0, 256], sizes = [8, 128], strides = [1, 1]} : vector<8x384xf32> to vector<8x128xf32>
    %c1_32 = arith.constant 1 : index
    %c2_33 = arith.constant 2 : index
    %c0_34 = arith.constant 0 : index
    %c0_35 = arith.constant 0 : index
    %46 = vector.load %arg2[%c1_32, %c2_33, %c0_34, %c0_35] : memref<2x3x8x8xbf16, #tpu.memory_space<vmem>>, vector<1x1x8x8xbf16>
    %47 = vector.shape_cast %46 : vector<1x1x8x8xbf16> to vector<8x8xbf16>
    %48 = arith.truncf %45 : vector<8x128xf32> to vector<8x128xbf16>
    %cst_36 = arith.constant dense<0.000000e+00> : vector<8x128xf32>
    %49 = tpu.matmul %47, %48, %cst_36 {dimension_numbers = #tpu.dot_dimension_numbers<[1], [0], [0], [1], [0, 0, 1, 1], [], []>} : vector<8x8xbf16>, vector<8x128xbf16>, vector<8x128xf32> -> vector<8x128xf32>
    %cst_37 = arith.constant 0.000000e+00 : f32
    %50 = vector.broadcast %cst_37 : f32 to vector<8x128xf32>
    %51 = arith.maximumf %49, %50 : vector<8x128xf32>
    %52 = arith.addf %44, %51 : vector<8x128xf32>
    %53 = tpu.concatenate %28, %52 in 0 : vector<8x128xf32>, vector<8x128xf32> -> vector<16x128xf32>
    %54 = arith.truncf %53 : vector<16x128xf32> to vector<16x128xbf16>
    %c0_38 = arith.constant 0 : index
    %c0_39 = arith.constant 0 : index
    %55 = vector.load %arg4[%c0_38, %c0_39] : memref<128x384xbf16, #tpu.memory_space<vmem>>, vector<128x384xbf16>
    %cst_40 = arith.constant dense<0.000000e+00> : vector<16x384xf32>
    %56 = tpu.matmul %54, %55, %cst_40 {dimension_numbers = #tpu.dot_dimension_numbers<[1], [0], [0], [1], [0, 0, 1, 1], [], []>} : vector<16x128xbf16>, vector<128x384xbf16>, vector<16x384xf32> -> vector<16x384xf32>
    %57 = vector.extract_strided_slice %56 {offsets = [0, 0], sizes = [8, 384], strides = [1, 1]} : vector<16x384xf32> to vector<8x384xf32>
    %58 = vector.extract_strided_slice %57 {offsets = [0, 0], sizes = [8, 128], strides = [1, 1]} : vector<8x384xf32> to vector<8x128xf32>
    %c0_41 = arith.constant 0 : index
    %c0_42 = arith.constant 0 : index
    %c0_43 = arith.constant 0 : index
    %c0_44 = arith.constant 0 : index
    %59 = vector.load %arg2[%c0_41, %c0_42, %c0_43, %c0_44] : memref<2x3x8x8xbf16, #tpu.memory_space<vmem>>, vector<1x1x8x8xbf16>
    %60 = vector.shape_cast %59 : vector<1x1x8x8xbf16> to vector<8x8xbf16>
    %61 = arith.truncf %58 : vector<8x128xf32> to vector<8x128xbf16>
    %cst_45 = arith.constant dense<0.000000e+00> : vector<8x128xf32>
    %62 = tpu.matmul %60, %61, %cst_45 {dimension_numbers = #tpu.dot_dimension_numbers<[1], [0], [0], [1], [0, 0, 1, 1], [], []>} : vector<8x8xbf16>, vector<8x128xbf16>, vector<8x128xf32> -> vector<8x128xf32>
    %cst_46 = arith.constant 0.000000e+00 : f32
    %63 = vector.broadcast %cst_46 : f32 to vector<8x128xf32>
    %64 = arith.maximumf %62, %63 : vector<8x128xf32>
    %65 = vector.extract_strided_slice %57 {offsets = [0, 128], sizes = [8, 128], strides = [1, 1]} : vector<8x384xf32> to vector<8x128xf32>
    %c0_47 = arith.constant 0 : index
    %c1_48 = arith.constant 1 : index
    %c0_49 = arith.constant 0 : index
    %c0_50 = arith.constant 0 : index
    %66 = vector.load %arg2[%c0_47, %c1_48, %c0_49, %c0_50] : memref<2x3x8x8xbf16, #tpu.memory_space<vmem>>, vector<1x1x8x8xbf16>
    %67 = vector.shape_cast %66 : vector<1x1x8x8xbf16> to vector<8x8xbf16>
    %68 = arith.truncf %65 : vector<8x128xf32> to vector<8x128xbf16>
    %cst_51 = arith.constant dense<0.000000e+00> : vector<8x128xf32>
    %69 = tpu.matmul %67, %68, %cst_51 {dimension_numbers = #tpu.dot_dimension_numbers<[1], [0], [0], [1], [0, 0, 1, 1], [], []>} : vector<8x8xbf16>, vector<8x128xbf16>, vector<8x128xf32> -> vector<8x128xf32>
    %cst_52 = arith.constant 0.000000e+00 : f32
    %70 = vector.broadcast %cst_52 : f32 to vector<8x128xf32>
    %71 = arith.maximumf %69, %70 : vector<8x128xf32>
    %72 = arith.addf %64, %71 : vector<8x128xf32>
    %73 = vector.extract_strided_slice %57 {offsets = [0, 256], sizes = [8, 128], strides = [1, 1]} : vector<8x384xf32> to vector<8x128xf32>
    %c0_53 = arith.constant 0 : index
    %c2_54 = arith.constant 2 : index
    %c0_55 = arith.constant 0 : index
    %c0_56 = arith.constant 0 : index
    %74 = vector.load %arg2[%c0_53, %c2_54, %c0_55, %c0_56] : memref<2x3x8x8xbf16, #tpu.memory_space<vmem>>, vector<1x1x8x8xbf16>
    %75 = vector.shape_cast %74 : vector<1x1x8x8xbf16> to vector<8x8xbf16>
    %76 = arith.truncf %73 : vector<8x128xf32> to vector<8x128xbf16>
    %cst_57 = arith.constant dense<0.000000e+00> : vector<8x128xf32>
    %77 = tpu.matmul %75, %76, %cst_57 {dimension_numbers = #tpu.dot_dimension_numbers<[1], [0], [0], [1], [0, 0, 1, 1], [], []>} : vector<8x8xbf16>, vector<8x128xbf16>, vector<8x128xf32> -> vector<8x128xf32>
    %cst_58 = arith.constant 0.000000e+00 : f32
    %78 = vector.broadcast %cst_58 : f32 to vector<8x128xf32>
    %79 = arith.maximumf %77, %78 : vector<8x128xf32>
    %80 = arith.addf %72, %79 : vector<8x128xf32>
    %81 = vector.extract_strided_slice %56 {offsets = [8, 0], sizes = [8, 384], strides = [1, 1]} : vector<16x384xf32> to vector<8x384xf32>
    %82 = vector.extract_strided_slice %81 {offsets = [0, 0], sizes = [8, 128], strides = [1, 1]} : vector<8x384xf32> to vector<8x128xf32>
    %c1_59 = arith.constant 1 : index
    %c0_60 = arith.constant 0 : index
    %c0_61 = arith.constant 0 : index
    %c0_62 = arith.constant 0 : index
    %83 = vector.load %arg2[%c1_59, %c0_60, %c0_61, %c0_62] : memref<2x3x8x8xbf16, #tpu.memory_space<vmem>>, vector<1x1x8x8xbf16>
    %84 = vector.shape_cast %83 : vector<1x1x8x8xbf16> to vector<8x8xbf16>
    %85 = arith.truncf %82 : vector<8x128xf32> to vector<8x128xbf16>
    %cst_63 = arith.constant dense<0.000000e+00> : vector<8x128xf32>
    %86 = tpu.matmul %84, %85, %cst_63 {dimension_numbers = #tpu.dot_dimension_numbers<[1], [0], [0], [1], [0, 0, 1, 1], [], []>} : vector<8x8xbf16>, vector<8x128xbf16>, vector<8x128xf32> -> vector<8x128xf32>
    %cst_64 = arith.constant 0.000000e+00 : f32
    %87 = vector.broadcast %cst_64 : f32 to vector<8x128xf32>
    %88 = arith.maximumf %86, %87 : vector<8x128xf32>
    %89 = vector.extract_strided_slice %81 {offsets = [0, 128], sizes = [8, 128], strides = [1, 1]} : vector<8x384xf32> to vector<8x128xf32>
    %c1_65 = arith.constant 1 : index
    %c1_66 = arith.constant 1 : index
    %c0_67 = arith.constant 0 : index
    %c0_68 = arith.constant 0 : index
    %90 = vector.load %arg2[%c1_65, %c1_66, %c0_67, %c0_68] : memref<2x3x8x8xbf16, #tpu.memory_space<vmem>>, vector<1x1x8x8xbf16>
    %91 = vector.shape_cast %90 : vector<1x1x8x8xbf16> to vector<8x8xbf16>
    %92 = arith.truncf %89 : vector<8x128xf32> to vector<8x128xbf16>
    %cst_69 = arith.constant dense<0.000000e+00> : vector<8x128xf32>
    %93 = tpu.matmul %91, %92, %cst_69 {dimension_numbers = #tpu.dot_dimension_numbers<[1], [0], [0], [1], [0, 0, 1, 1], [], []>} : vector<8x8xbf16>, vector<8x128xbf16>, vector<8x128xf32> -> vector<8x128xf32>
    %cst_70 = arith.constant 0.000000e+00 : f32
    %94 = vector.broadcast %cst_70 : f32 to vector<8x128xf32>
    %95 = arith.maximumf %93, %94 : vector<8x128xf32>
    %96 = arith.addf %88, %95 : vector<8x128xf32>
    %97 = vector.extract_strided_slice %81 {offsets = [0, 256], sizes = [8, 128], strides = [1, 1]} : vector<8x384xf32> to vector<8x128xf32>
    %c1_71 = arith.constant 1 : index
    %c2_72 = arith.constant 2 : index
    %c0_73 = arith.constant 0 : index
    %c0_74 = arith.constant 0 : index
    %98 = vector.load %arg2[%c1_71, %c2_72, %c0_73, %c0_74] : memref<2x3x8x8xbf16, #tpu.memory_space<vmem>>, vector<1x1x8x8xbf16>
    %99 = vector.shape_cast %98 : vector<1x1x8x8xbf16> to vector<8x8xbf16>
    %100 = arith.truncf %97 : vector<8x128xf32> to vector<8x128xbf16>
    %cst_75 = arith.constant dense<0.000000e+00> : vector<8x128xf32>
    %101 = tpu.matmul %99, %100, %cst_75 {dimension_numbers = #tpu.dot_dimension_numbers<[1], [0], [0], [1], [0, 0, 1, 1], [], []>} : vector<8x8xbf16>, vector<8x128xbf16>, vector<8x128xf32> -> vector<8x128xf32>
    %cst_76 = arith.constant 0.000000e+00 : f32
    %102 = vector.broadcast %cst_76 : f32 to vector<8x128xf32>
    %103 = arith.maximumf %101, %102 : vector<8x128xf32>
    %104 = arith.addf %96, %103 : vector<8x128xf32>
    %105 = tpu.concatenate %80, %104 in 0 : vector<8x128xf32>, vector<8x128xf32> -> vector<16x128xf32>
    %106 = arith.truncf %105 : vector<16x128xf32> to vector<16x128xbf16>
    %c0_77 = arith.constant 0 : index
    %c0_78 = arith.constant 0 : index
    %107 = vector.load %arg5[%c0_77, %c0_78] : memref<128x384xbf16, #tpu.memory_space<vmem>>, vector<128x384xbf16>
    %cst_79 = arith.constant dense<0.000000e+00> : vector<16x384xf32>
    %108 = tpu.matmul %106, %107, %cst_79 {dimension_numbers = #tpu.dot_dimension_numbers<[1], [0], [0], [1], [0, 0, 1, 1], [], []>} : vector<16x128xbf16>, vector<128x384xbf16>, vector<16x384xf32> -> vector<16x384xf32>
    %109 = vector.extract_strided_slice %108 {offsets = [0, 0], sizes = [8, 384], strides = [1, 1]} : vector<16x384xf32> to vector<8x384xf32>
    %110 = vector.extract_strided_slice %109 {offsets = [0, 0], sizes = [8, 128], strides = [1, 1]} : vector<8x384xf32> to vector<8x128xf32>
    %c0_80 = arith.constant 0 : index
    %c0_81 = arith.constant 0 : index
    %c0_82 = arith.constant 0 : index
    %c0_83 = arith.constant 0 : index
    %111 = vector.load %arg2[%c0_80, %c0_81, %c0_82, %c0_83] : memref<2x3x8x8xbf16, #tpu.memory_space<vmem>>, vector<1x1x8x8xbf16>
    %112 = vector.shape_cast %111 : vector<1x1x8x8xbf16> to vector<8x8xbf16>
    %113 = arith.truncf %110 : vector<8x128xf32> to vector<8x128xbf16>
    %cst_84 = arith.constant dense<0.000000e+00> : vector<8x128xf32>
    %114 = tpu.matmul %112, %113, %cst_84 {dimension_numbers = #tpu.dot_dimension_numbers<[1], [0], [0], [1], [0, 0, 1, 1], [], []>} : vector<8x8xbf16>, vector<8x128xbf16>, vector<8x128xf32> -> vector<8x128xf32>
    %115 = vector.extract_strided_slice %109 {offsets = [0, 128], sizes = [8, 128], strides = [1, 1]} : vector<8x384xf32> to vector<8x128xf32>
    %c0_85 = arith.constant 0 : index
    %c1_86 = arith.constant 1 : index
    %c0_87 = arith.constant 0 : index
    %c0_88 = arith.constant 0 : index
    %116 = vector.load %arg2[%c0_85, %c1_86, %c0_87, %c0_88] : memref<2x3x8x8xbf16, #tpu.memory_space<vmem>>, vector<1x1x8x8xbf16>
    %117 = vector.shape_cast %116 : vector<1x1x8x8xbf16> to vector<8x8xbf16>
    %118 = arith.truncf %115 : vector<8x128xf32> to vector<8x128xbf16>
    %cst_89 = arith.constant dense<0.000000e+00> : vector<8x128xf32>
    %119 = tpu.matmul %117, %118, %cst_89 {dimension_numbers = #tpu.dot_dimension_numbers<[1], [0], [0], [1], [0, 0, 1, 1], [], []>} : vector<8x8xbf16>, vector<8x128xbf16>, vector<8x128xf32> -> vector<8x128xf32>
    %120 = arith.addf %114, %119 : vector<8x128xf32>
    %121 = vector.extract_strided_slice %109 {offsets = [0, 256], sizes = [8, 128], strides = [1, 1]} : vector<8x384xf32> to vector<8x128xf32>
    %c0_90 = arith.constant 0 : index
    %c2_91 = arith.constant 2 : index
    %c0_92 = arith.constant 0 : index
    %c0_93 = arith.constant 0 : index
    %122 = vector.load %arg2[%c0_90, %c2_91, %c0_92, %c0_93] : memref<2x3x8x8xbf16, #tpu.memory_space<vmem>>, vector<1x1x8x8xbf16>
    %123 = vector.shape_cast %122 : vector<1x1x8x8xbf16> to vector<8x8xbf16>
    %124 = arith.truncf %121 : vector<8x128xf32> to vector<8x128xbf16>
    %cst_94 = arith.constant dense<0.000000e+00> : vector<8x128xf32>
    %125 = tpu.matmul %123, %124, %cst_94 {dimension_numbers = #tpu.dot_dimension_numbers<[1], [0], [0], [1], [0, 0, 1, 1], [], []>} : vector<8x8xbf16>, vector<8x128xbf16>, vector<8x128xf32> -> vector<8x128xf32>
    %126 = arith.addf %120, %125 : vector<8x128xf32>
    %127 = vector.extract_strided_slice %108 {offsets = [8, 0], sizes = [8, 384], strides = [1, 1]} : vector<16x384xf32> to vector<8x384xf32>
    %128 = vector.extract_strided_slice %127 {offsets = [0, 0], sizes = [8, 128], strides = [1, 1]} : vector<8x384xf32> to vector<8x128xf32>
    %c1_95 = arith.constant 1 : index
    %c0_96 = arith.constant 0 : index
    %c0_97 = arith.constant 0 : index
    %c0_98 = arith.constant 0 : index
    %129 = vector.load %arg2[%c1_95, %c0_96, %c0_97, %c0_98] : memref<2x3x8x8xbf16, #tpu.memory_space<vmem>>, vector<1x1x8x8xbf16>
    %130 = vector.shape_cast %129 : vector<1x1x8x8xbf16> to vector<8x8xbf16>
    %131 = arith.truncf %128 : vector<8x128xf32> to vector<8x128xbf16>
    %cst_99 = arith.constant dense<0.000000e+00> : vector<8x128xf32>
    %132 = tpu.matmul %130, %131, %cst_99 {dimension_numbers = #tpu.dot_dimension_numbers<[1], [0], [0], [1], [0, 0, 1, 1], [], []>} : vector<8x8xbf16>, vector<8x128xbf16>, vector<8x128xf32> -> vector<8x128xf32>
    %133 = vector.extract_strided_slice %127 {offsets = [0, 128], sizes = [8, 128], strides = [1, 1]} : vector<8x384xf32> to vector<8x128xf32>
    %c1_100 = arith.constant 1 : index
    %c1_101 = arith.constant 1 : index
    %c0_102 = arith.constant 0 : index
    %c0_103 = arith.constant 0 : index
    %134 = vector.load %arg2[%c1_100, %c1_101, %c0_102, %c0_103] : memref<2x3x8x8xbf16, #tpu.memory_space<vmem>>, vector<1x1x8x8xbf16>
    %135 = vector.shape_cast %134 : vector<1x1x8x8xbf16> to vector<8x8xbf16>
    %136 = arith.truncf %133 : vector<8x128xf32> to vector<8x128xbf16>
    %cst_104 = arith.constant dense<0.000000e+00> : vector<8x128xf32>
    %137 = tpu.matmul %135, %136, %cst_104 {dimension_numbers = #tpu.dot_dimension_numbers<[1], [0], [0], [1], [0, 0, 1, 1], [], []>} : vector<8x8xbf16>, vector<8x128xbf16>, vector<8x128xf32> -> vector<8x128xf32>
    %138 = arith.addf %132, %137 : vector<8x128xf32>
    %139 = vector.extract_strided_slice %127 {offsets = [0, 256], sizes = [8, 128], strides = [1, 1]} : vector<8x384xf32> to vector<8x128xf32>
    %c1_105 = arith.constant 1 : index
    %c2_106 = arith.constant 2 : index
    %c0_107 = arith.constant 0 : index
    %c0_108 = arith.constant 0 : index
    %140 = vector.load %arg2[%c1_105, %c2_106, %c0_107, %c0_108] : memref<2x3x8x8xbf16, #tpu.memory_space<vmem>>, vector<1x1x8x8xbf16>
    %141 = vector.shape_cast %140 : vector<1x1x8x8xbf16> to vector<8x8xbf16>
    %142 = arith.truncf %139 : vector<8x128xf32> to vector<8x128xbf16>
    %cst_109 = arith.constant dense<0.000000e+00> : vector<8x128xf32>
    %143 = tpu.matmul %141, %142, %cst_109 {dimension_numbers = #tpu.dot_dimension_numbers<[1], [0], [0], [1], [0, 0, 1, 1], [], []>} : vector<8x8xbf16>, vector<8x128xbf16>, vector<8x128xf32> -> vector<8x128xf32>
    %144 = arith.addf %138, %143 : vector<8x128xf32>
    %145 = tpu.concatenate %126, %144 in 0 : vector<8x128xf32>, vector<8x128xf32> -> vector<16x128xf32>
    %146 = vector.shape_cast %145 : vector<16x128xf32> to vector<2x8x128xf32>
    %c0_110 = arith.constant 0 : index
    %c0_111 = arith.constant 0 : index
    %c0_112 = arith.constant 0 : index
    %147 = vector.load %arg6[%c0_110, %c0_111, %c0_112] : memref<2x8x128xf32, #tpu.memory_space<vmem>>, vector<2x8x128xf32>
    tpu.vector_store %arg6[%c0_110, %c0_111, %c0_112], %146 {strides = array<i32>} : memref<2x8x128xf32, #tpu.memory_space<vmem>>, vector<2x8x128xf32>,
    return
  }
  func.func @transform_0(%arg0: i32) -> (i32, i32, i32) {
    %c0_i32 = arith.constant 0 : i32
    %c0_i32_0 = arith.constant 0 : i32
    %c0_i32_1 = arith.constant 0 : i32
    return %arg0, %c0_i32, %c0_i32_0 : i32, i32, i32
  }
  func.func @transform_1(%arg0: i32) -> (i32, i32, i32, i32) {
    %c0_i32 = arith.constant 0 : i32
    %c0_i32_0 = arith.constant 0 : i32
    %c0_i32_1 = arith.constant 0 : i32
    %c0_i32_2 = arith.constant 0 : i32
    return %arg0, %c0_i32, %c0_i32_0, %c0_i32_1 : i32, i32, i32, i32
  }
  func.func @transform_2(%arg0: i32) -> (i32, i32) {
    %c0_i32 = arith.constant 0 : i32
    %c0_i32_0 = arith.constant 0 : i32
    %c0_i32_1 = arith.constant 0 : i32
    return %c0_i32, %c0_i32_0 : i32, i32
  }
  func.func @transform_3(%arg0: i32) -> (i32, i32) {
    %c0_i32 = arith.constant 0 : i32
    %c0_i32_0 = arith.constant 0 : i32
    %c0_i32_1 = arith.constant 0 : i32
    return %c0_i32, %c0_i32_0 : i32, i32
  }
  func.func @transform_4(%arg0: i32) -> (i32, i32) {
    %c0_i32 = arith.constant 0 : i32
    %c0_i32_0 = arith.constant 0 : i32
    %c0_i32_1 = arith.constant 0 : i32
    return %c0_i32, %c0_i32_0 : i32, i32
  }
  func.func @transform_5(%arg0: i32) -> (i32, i32, i32) {
    %c0_i32 = arith.constant 0 : i32
    %c0_i32_0 = arith.constant 0 : i32
    %c0_i32_1 = arith.constant 0 : i32
    return %arg0, %c0_i32, %c0_i32_0 : i32, i32, i32
  }
}

</mosaic_0001>

<llo_original>
// kernel: _lambda_.1
$region0: #{_lambda_.1}
  #allocation0 [shape = 'u32[]', space=smem, size = 0x4, offset = 0x4, fixed_abs, tag = 'smem constant byte address 0x4 - core index']
  #allocation1 [shape = 'u32[144,128]{1,0:T(1,128)}', space=vmem, size = 0x12000, scoped, tag = 'internal scratch']
  %s0 = inlined_call_operand.vmem [shape: f32[4,8,16], index: 0, kind: input, shape index: {}]
  %s1 = inlined_call_operand.vmem [shape: bf16[4,3,8,8], index: 1, kind: input, shape index: {}]
  %s2 = inlined_call_operand.vmem [shape: bf16[16,384], index: 2, kind: input, shape index: {}]
  %s3 = inlined_call_operand.hbm [shape: bf16[128,384], index: 3, kind: input, shape index: {}]
  %s4 = inlined_call_operand.hbm [shape: bf16[128,384], index: 4, kind: input, shape index: {}]
  %s5 = inlined_call_operand.hbm [shape: f32[4,8,128], index: 5, kind: output, shape index: {}]
  %s6 = sld [smem:[#allocation0]]
  $region61: #{_lambda_.1} parent=0
    _
  %s8 = ssub.s32 1, %s6
  %s9 = scalar_select 0, %s8, %s6
  $region1: #{_lambda_.1} parent=0
    #allocation2 [shape = 'u8[98304]{0}', space=vmem, size = 0x18000, scoped, tag = 'input window, operand 3, single buffered']
    #allocation3 [shape = 's32[2]{0}', space=sflag, size = 0x8, scoped, tag = 'scoped memory for _lambda_.1']
    #allocation4 [shape = 's32[2]{0}', space=sflag, size = 0x8, scoped, tag = 'scoped memory for _lambda_.1']
    #allocation5 [shape = 'u8[98304]{0}', space=vmem, size = 0x18000, scoped, tag = 'input window, operand 4, single buffered']
    #allocation6 [shape = 's32[1]{0}', space=sflag, size = 0x4, scoped, tag = 'scoped memory for _lambda_.1']
    #allocation7 [shape = 'u8[16384]{0}', space=vmem, size = 0x4000, scoped, tag = 'output window, operand 0']
    %10 = vsyncpa [#allocation3], 0
    %11 = vsyncpa [#allocation6], 0
    %12 = vsyncpa [#allocation4], 0
    %s13 = scalar_lea.sflag [#allocation4], 1
    %14 = vsyncpa %s13, 0
    loop: start=0, step=1, limit=4
    $region2: #{_lambda_.1} parent=1 // loop_pre_header
      _
    $region3: #{_lambda_.1} parent=1 // loop_header
      %s16 = sphi 0, %s20
      %p17 = scmp.ge.s32.totalorder %s16, 4
      %s26 = sphi 0, %s28
      %s29 = sphi 0, %s26
      %s30 = sphi 0, %s29
      %s46 = sphi 0, %s30
      %s52 = sphi 0, %s54
      %s55 = sphi 0, %s52
      %s56 = sphi 0, %s55
      %s72 = sphi 0, %s56
      %s76 = sphi 0, %s76
      %s78 = sphi 0, %s76
      %s79 = sphi 0, %s78
      %s93 = sphi 0, %s79
      %s97 = sphi 0, %s97
      %s99 = sphi 0, %s97
      %s100 = sphi 0, %s99
      %s114 = sphi 0, %s100
      %s118 = sphi 0, %s118
      %s120 = sphi 0, %s118
      %s121 = sphi 0, %s120
      %s135 = sphi 0, %s121
      %s141 = sphi 0, %s143
      %s144 = sphi 0, %s141
      %s145 = sphi 0, %s144
      %s161 = sphi 0, %s145
    $region4: #{_lambda_.1} parent=1 // loop_header_branch
      %19 = sbr.rel (%p17) target = $region8
    $region5: #{_lambda_.1} parent=1 // loop_body
      %s21 = ssub.s32 %s16, 1
      %s22 = ssub.s32 %s16, 2
      %s23 = sadd.s32 %s16, 1
      %s24 = ssub.s32 %s16, %s23
      %p25 = scmp.eq.s32.totalorder %s24, 0
      %s27 = sadd.s32 %s26, 1
      %s28 = scalar_select %p25, %s26, %s27
      %p31 = pneg %p25
      %p32 = scmp.eq.s32.totalorder %s16, 1
      %p33 = por %p31, %p32
      %p34 = scmp.ne.s32.totalorder %s26, %s29
      %p35 = scmp.eq.s32.totalorder %s16, 0
      %p36 = por %p34, %p35
      %p37 = scmp.ne.s32.totalorder %s26, %s29
      %p38 = scmp.eq.s32.totalorder %s21, 1
      %p39 = por %p37, %p38
      %p40 = scmp.ne.s32.totalorder %s29, %s30
      %p41 = scmp.eq.s32.totalorder %s21, 0
      %p42 = por %p40, %p41
      %p43 = scmp.ne.s32.totalorder %s29, %s30
      %p44 = scmp.eq.s32.totalorder %s22, 1
      %p45 = por %p43, %p44
      %p47 = scmp.ne.s32.totalorder %s30, %s46
      %p48 = scmp.eq.s32.totalorder %s22, 0
      %p49 = por %p47, %p48
      %s50 = ssub.s32 %s16, %s23
      %p51 = scmp.eq.s32.totalorder %s50, 0
      %s53 = sadd.s32 %s52, 1
      %s54 = scalar_select %p51, %s52, %s53
      %p57 = pneg %p51
      %p58 = scmp.eq.s32.totalorder %s16, 1
      %p59 = por %p57, %p58
      %p60 = scmp.ne.s32.totalorder %s52, %s55
      %p61 = scmp.eq.s32.totalorder %s16, 0
      %p62 = por %p60, %p61
      %p63 = scmp.ne.s32.totalorder %s52, %s55
      %p64 = scmp.eq.s32.totalorder %s21, 1
      %p65 = por %p63, %p64
      %p66 = scmp.ne.s32.totalorder %s55, %s56
      %p67 = scmp.eq.s32.totalorder %s21, 0
      %p68 = por %p66, %p67
      %p69 = scmp.ne.s32.totalorder %s55, %s56
      %p70 = scmp.eq.s32.totalorder %s22, 1
      %p71 = por %p69, %p70
      %p73 = scmp.ne.s32.totalorder %s56, %s72
      %p74 = scmp.eq.s32.totalorder %s22, 0
      %p75 = por %p73, %p74
      %s77 = sadd.s32 %s76, 1
      %p80 = scmp.eq.s32.totalorder %s16, 1
      %p81 = scmp.ne.s32.totalorder %s76, %s78
      %p82 = scmp.eq.s32.totalorder %s16, 0
      %p83 = por %p81, %p82
      %p84 = scmp.ne.s32.totalorder %s76, %s78
      %p85 = scmp.eq.s32.totalorder %s21, 1
      %p86 = por %p84, %p85
      %p87 = scmp.ne.s32.totalorder %s78, %s79
      %p88 = scmp.eq.s32.totalorder %s21, 0
      %p89 = por %p87, %p88
      %p90 = scmp.ne.s32.totalorder %s78, %s79
      %p91 = scmp.eq.s32.totalorder %s22, 1
      %p92 = por %p90, %p91
      %p94 = scmp.ne.s32.totalorder %s79, %s93
      %p95 = scmp.eq.s32.totalorder %s22, 0
      %p96 = por %p94, %p95
      %s98 = sadd.s32 %s97, 1
      %p101 = scmp.eq.s32.totalorder %s16, 1
      %p102 = scmp.ne.s32.totalorder %s97, %s99
      %p103 = scmp.eq.s32.totalorder %s16, 0
      %p104 = por %p102, %p103
      %p105 = scmp.ne.s32.totalorder %s97, %s99
      %p106 = scmp.eq.s32.totalorder %s21, 1
      %p107 = por %p105, %p106
      %p108 = scmp.ne.s32.totalorder %s99, %s100
      %p109 = scmp.eq.s32.totalorder %s21, 0
      %p110 = por %p108, %p109
      %p111 = scmp.ne.s32.totalorder %s99, %s100
      %p112 = scmp.eq.s32.totalorder %s22, 1
      %p113 = por %p111, %p112
      %p115 = scmp.ne.s32.totalorder %s100, %s114
      %p116 = scmp.eq.s32.totalorder %s22, 0
      %p117 = por %p115, %p116
      %s119 = sadd.s32 %s118, 1
      %p122 = scmp.eq.s32.totalorder %s16, 1
      %p123 = scmp.ne.s32.totalorder %s118, %s120
      %p124 = scmp.eq.s32.totalorder %s16, 0
      %p125 = por %p123, %p124
      %p126 = scmp.ne.s32.totalorder %s118, %s120
      %p127 = scmp.eq.s32.totalorder %s21, 1
      %p128 = por %p126, %p127
      %p129 = scmp.ne.s32.totalorder %s120, %s121
      %p130 = scmp.eq.s32.totalorder %s21, 0
      %p131 = por %p129, %p130
      %p132 = scmp.ne.s32.totalorder %s120, %s121
      %p133 = scmp.eq.s32.totalorder %s22, 1
      %p134 = por %p132, %p133
      %p136 = scmp.ne.s32.totalorder %s121, %s135
      %p137 = scmp.eq.s32.totalorder %s22, 0
      %p138 = por %p136, %p137
      %s139 = ssub.s32 %s16, %s23
      %p140 = scmp.eq.s32.totalorder %s139, 0
      %s142 = sadd.s32 %s141, 1
      %s143 = scalar_select %p140, %s141, %s142
      %p146 = pneg %p140
      %p147 = scmp.eq.s32.totalorder %s16, 1
      %p148 = por %p146, %p147
      %p149 = scmp.ne.s32.totalorder %s141, %s144
      %p150 = scmp.eq.s32.totalorder %s16, 0
      %p151 = por %p149, %p150
      %p152 = scmp.ne.s32.totalorder %s141, %s144
      %p153 = scmp.eq.s32.totalorder %s21, 1
      %p154 = por %p152, %p153
      %p155 = scmp.ne.s32.totalorder %s144, %s145
      %p156 = scmp.eq.s32.totalorder %s21, 0
      %p157 = por %p155, %p156
      %p158 = scmp.ne.s32.totalorder %s144, %s145
      %p159 = scmp.eq.s32.totalorder %s22, 1
      %p160 = por %p158, %p159
      %p162 = scmp.ne.s32.totalorder %s145, %s161
      %p163 = scmp.eq.s32.totalorder %s22, 0
      %p164 = por %p162, %p163
      %p165 = scmp.le.s32.totalorder 1, %s16
      %p166 = scmp.lt.s32.totalorder %s16, 3
      %p167 = pnand %p165, %p166
      %p168 = pneg %p167
      // Predicated region
      $region9: #{_lambda_.1} parent=5 // pred_check
        _
      $region10: #{_lambda_.1} parent=5 // pred_check_branch
        %170 = sbr.rel (%p167) target = $region12
      $region11: #{_lambda_.1} parent=5 // pred_region
        %s171 = ssub.s32 %s16, 1
        // Predicated region
        $region13: #{_lambda_.1} parent=11 // pred_check
          %p172 = pneg %p89
        $region14: #{_lambda_.1} parent=11 // pred_check_branch
          %174 = sbr.rel (%p172) target = $region16
        $region15: #{_lambda_.1} parent=11 // pred_region
          _
        $region16: #{_lambda_.1} parent=11 // pred_fallthru
          _
        // Predicated region
        $region17: #{_lambda_.1} parent=11 // pred_check
          %p175 = pneg %p110
        $region18: #{_lambda_.1} parent=11 // pred_check_branch
          %177 = sbr.rel (%p175) target = $region20
        $region19: #{_lambda_.1} parent=11 // pred_region
          %s179 = ssub.s32 3072, 3072
          %180 = vsyncadd [#allocation3], %s179
          %s181 = sshll.u32 [#allocation2], 4
          %s182 = int_to_ptr.vmem [resolvable:$true] %s181
          %187 = dma.hbm_to_vmem [thread:$0]  %s3, 3072, %s182, [#allocation3], 192, 192, 12
        $region20: #{_lambda_.1} parent=11 // pred_fallthru
          _
        // Predicated region
        $region21: #{_lambda_.1} parent=11 // pred_check
          %p188 = pneg %p131
        $region22: #{_lambda_.1} parent=11 // pred_check_branch
          %190 = sbr.rel (%p188) target = $region24
        $region23: #{_lambda_.1} parent=11 // pred_region
          %s192 = ssub.s32 3072, 3072
          %193 = vsyncadd [#allocation6], %s192
          %s194 = sshll.u32 [#allocation5], 4
          %s195 = int_to_ptr.vmem [resolvable:$true] %s194
          %200 = dma.hbm_to_vmem [thread:$0]  %s4, 3072, %s195, [#allocation6], 192, 192, 12
        $region24: #{_lambda_.1} parent=11 // pred_fallthru
          _
      $region12: #{_lambda_.1} parent=5 // pred_fallthru
        _
      %p201 = scmp.lt.s32.totalorder %s16, 2
      // Predicated region
      $region25: #{_lambda_.1} parent=5 // pred_check
        %p202 = pneg %p201
      $region26: #{_lambda_.1} parent=5 // pred_check_branch
        %204 = sbr.rel (%p202) target = $region28
      $region27: #{_lambda_.1} parent=5 // pred_region
        // Predicated region
        $region29: #{_lambda_.1} parent=27 // pred_check
          %p205 = pneg %p36
        $region30: #{_lambda_.1} parent=27 // pred_check_branch
          %207 = sbr.rel (%p205) target = $region32
        $region31: #{_lambda_.1} parent=27 // pred_region
          %s208 = smul.u32 2, %s16
          %p209 = scmp.lt.s32.totalorder %s208, 3
          %s210 = scalar_select %p209, %s208, 3
          %s211 = smul.addr %s210, 8
          %s212 = scalar_lea.vmem %s0, %s211
          %s213 = smul.u32 2, %s16
        $region32: #{_lambda_.1} parent=27 // pred_fallthru
          _
        // Predicated region
        $region33: #{_lambda_.1} parent=27 // pred_check
          %p214 = pneg %p62
        $region34: #{_lambda_.1} parent=27 // pred_check_branch
          %216 = sbr.rel (%p214) target = $region36
        $region35: #{_lambda_.1} parent=27 // pred_region
          %s217 = smul.u32 2, %s16
          %p218 = scmp.lt.s32.totalorder %s217, 3
          %s219 = scalar_select %p218, %s217, 3
          %s220 = smul.addr %s219, 3
          %s221 = smul.addr %s220, 4
          %s222 = scalar_lea.vmem %s1, %s221
          %s223 = smul.u32 2, %s16
        $region36: #{_lambda_.1} parent=27 // pred_fallthru
          _
      $region28: #{_lambda_.1} parent=5 // pred_fallthru
        _
      %p224 = scmp.le.s32.totalorder 1, %s16
      %p225 = scmp.lt.s32.totalorder %s16, 3
      %p226 = pnand %p224, %p225
      %p227 = pneg %p226
      // Predicated region
      $region37: #{_lambda_.1} parent=5 // pred_check
        _
      $region38: #{_lambda_.1} parent=5 // pred_check_branch
        %229 = sbr.rel (%p226) target = $region40
      $region39: #{_lambda_.1} parent=5 // pred_region
        %s230 = ssub.s32 %s16, 1
        // Predicated region
        $region41: #{_lambda_.1} parent=39 // pred_check
          %p231 = pneg %p110
        $region42: #{_lambda_.1} parent=39 // pred_check_branch
          %233 = sbr.rel (%p231) target = $region44
        $region43: #{_lambda_.1} parent=39 // pred_region
          %234 = dma.done [#allocation3], 3072
        $region44: #{_lambda_.1} parent=39 // pred_fallthru
          _
        // Predicated region
        $region45: #{_lambda_.1} parent=39 // pred_check
          %p235 = pneg %p131
        $region46: #{_lambda_.1} parent=39 // pred_check_branch
          %237 = sbr.rel (%p235) target = $region48
        $region47: #{_lambda_.1} parent=39 // pred_region
          %238 = dma.done [#allocation6], 3072
        $region48: #{_lambda_.1} parent=39 // pred_fallthru
          _
        %s239 = smul.u32 2, %s21
        %p240 = scmp.lt.s32.totalorder %s239, 3
        %s241 = scalar_select %p240, %s239, 3
        %s242 = smul.addr %s241, 8
        %s243 = scalar_lea.vmem %s0, %s242
        %p244 = pneg %p42
        %p245 = pneg %p39
        %s246 = smul.u32 2, %s21
        %p247 = scmp.lt.s32.totalorder %s246, 3
        %s248 = scalar_select %p247, %s246, 3
        %s249 = smul.addr %s248, 3
        %s250 = smul.addr %s249, 4
        %s251 = scalar_lea.vmem %s1, %s250
        %p252 = pneg %p68
        %p253 = pneg %p65
        %p254 = pneg %p89
        %p255 = pneg %p86
        %p256 = pneg %p110
        %p257 = pneg %p107
        %p258 = pneg %p131
        %p259 = pneg %p128
        %p260 = pneg %p157
        %p261 = pneg %p154
        %s262 = sand.u32 %s144, 1
        %s263 = scalar_lea.sflag [#allocation4], %s262
        %s264 = sand.u32 %s144, 1
        %s265 = smul.addr %s264, 16
        %s266 = scalar_lea.vmem [#allocation7], %s265
        %s267 = smul.u32 2, %s21
        %p268 = scmp.lt.s32.totalorder %s267, 3
        %s269 = scalar_select %p268, %s267, 3
        %s270 = smul.addr %s269, 8
        %s271 = scalar_lea.vmem %s0, %s270
        %s272 = smul.u32 2, %s21
        %s273 = smul.u32 2, %s21
        %p274 = scmp.lt.s32.totalorder %s273, 3
        %s275 = scalar_select %p274, %s273, 3
        %s276 = smul.addr %s275, 3
        %s277 = smul.addr %s276, 4
        %s278 = scalar_lea.vmem %s1, %s277
        %s279 = smul.u32 2, %s21
        %s280 = smul.u32 2, %s21
        %v282 = vld [vmem:[%s271] sm:$0xff]
        %v283 = vld [vmem:[%s271 + $0x8] sm:$0xff]
        %v284 = vpack.c.bf16 %v283, %v282
        %v285 = vld [vmem:[%s2] sm:$0xff]
        %v286 = vld [vmem:[%s2 + $0x8] sm:$0xf]
        %v287 = vld [vmem:[%s2 + $0xc] sm:$0xff]
        %v288 = vld [vmem:[%s2 + $0x14] sm:$0xf]
        %v293 = vunpack.c.l.b16 %v285
        %v294 = vunpack.c.h.b16 %v285
        %v295 = vunpack.c.l.b16 %v286
        %v296 = vunpack.c.l.b16 %v287
        %v297 = vunpack.c.h.b16 %v287
        %v298 = vunpack.c.l.b16 %v288
        %v299 = vpack.c.b16 %v296, %v293
        %v300 = vpack.c.b16 %v297, %v294
        %v301 = vpack.c.b16 %v298, %v295
        %vm305 = vcmask 130048
        %v307 = vsel %vm305, %v284, 0
        %309 = vmatprep.subr.bf16.mxu0 0
        %310 = vmatpush1.bf16.msra.mxu0 0
        %311 = vmatprep.subr.bf16.mxu0 0
        %312 = vmatpush1.bf16.msra.mxu0 0
        %313 = vmatprep.subr.bf16.mxu0 0
        %314 = vmatpush1.bf16.msra.mxu0 0
        %315 = vmatprep.subr.bf16.mxu0 0
        %316 = vmatpush1.bf16.msra.mxu0 0
        %317 = vmatprep.subr.bf16.mxu0 0
        %318 = vmatpush1.bf16.msra.mxu0 0
        %319 = vmatprep.subr.bf16.mxu0 0
        %320 = vmatpush1.bf16.msra.mxu0 0
        %321 = vmatprep.subr.bf16.mxu0 0
        %322 = vmatpush1.bf16.msra.mxu0 0
        %323 = vmatprep.subr.bf16.mxu0 %v300
        %324 = vmatpush1.bf16.msra.mxu0 %v299
        %325 = vmatprep.subr.bf16.mxu0 0
        %326 = vmatpush2.bf16.msra.mxu0 0
        %327 = vmatprep.subr.bf16.mxu0 0
        %328 = vmatpush2.bf16.msra.mxu0 0
        %329 = vmatprep.subr.bf16.mxu0 0
        %330 = vmatpush2.bf16.msra.mxu0 0
        %331 = vmatprep.subr.bf16.mxu0 0
        %332 = vmatpush2.bf16.msra.mxu0 0
        %333 = vmatprep.subr.bf16.mxu0 0
        %334 = vmatpush2.bf16.msra.mxu0 0
        %335 = vmatprep.subr.bf16.mxu0 0
        %336 = vmatpush2.bf16.msra.mxu0 0
        %337 = vmatprep.subr.bf16.mxu0 0
        %338 = vmatpush2.bf16.msra.mxu0 0
        %339 = vmatprep.subr.bf16.mxu0 0
        %340 = vmatpush2.bf16.msra.mxu0 0
        %341 = vmatprep.mubr.bf16.mxu0 0
        %342 = vmatmul.mubr.bf16.gmra.mxu0 %v307
        %v343 = vpop.f32.mrf.mxu0
        %v344 = vadd.f32 0.0, %v343
        %v345 = vpop.f32.mrf.mxu0
        %v346 = vadd.f32 0.0, %v345
        %v347 = vpop.f32.mrf.mxu0
        %v348 = vadd.f32 0.0, %v347
        %v349 = vpop.f32.mrf.mxu0
        %v350 = vadd.f32 0.0, %v349
        %351 = vdwg.mxu0
        %352 = vmatprep.subr.bf16.mxu0 0
        %353 = vmatpush1.bf16.msra.mxu0 0
        %354 = vmatprep.subr.bf16.mxu0 0
        %355 = vmatpush1.bf16.msra.mxu0 0
        %356 = vmatprep.subr.bf16.mxu0 0
        %357 = vmatpush1.bf16.msra.mxu0 0
        %358 = vmatprep.subr.bf16.mxu0 0
        %359 = vmatpush1.bf16.msra.mxu0 0
        %360 = vmatprep.subr.bf16.mxu0 0
        %361 = vmatpush1.bf16.msra.mxu0 0
        %362 = vmatprep.subr.bf16.mxu0 0
        %363 = vmatpush1.bf16.msra.mxu0 0
        %364 = vmatprep.subr.bf16.mxu0 0
        %365 = vmatpush1.bf16.msra.mxu0 0
        %366 = vmatprep.subr.bf16.mxu0 0
        %367 = vmatpush1.bf16.msra.mxu0 %v301
        %368 = vmatprep.subr.bf16.mxu0 0
        %369 = vmatpush2.bf16.msra.mxu0 0
        %370 = vmatprep.subr.bf16.mxu0 0
        %371 = vmatpush2.bf16.msra.mxu0 0
        %372 = vmatprep.subr.bf16.mxu0 0
        %373 = vmatpush2.bf16.msra.mxu0 0
        %374 = vmatprep.subr.bf16.mxu0 0
        %375 = vmatpush2.bf16.msra.mxu0 0
        %376 = vmatprep.subr.bf16.mxu0 0
        %377 = vmatpush2.bf16.msra.mxu0 0
        %378 = vmatprep.subr.bf16.mxu0 0
        %379 = vmatpush2.bf16.msra.mxu0 0
        %380 = vmatprep.subr.bf16.mxu0 0
        %381 = vmatpush2.bf16.msra.mxu0 0
        %382 = vmatprep.subr.bf16.mxu0 0
        %383 = vmatpush2.bf16.msra.mxu0 0
        %384 = vmatprep.mubr.bf16.mxu0 0
        %385 = vmatmul.mubr.bf16.gmra.mxu0 %v307
        %v386 = vpop.f32.mrf.mxu0
        %v387 = vadd.f32 0.0, %v386
        %v388 = vpop.f32.mrf.mxu0
        %v389 = vpop.f32.mrf.mxu0
        %v390 = vadd.f32 0.0, %v389
        %v391 = vpop.f32.mrf.mxu0
        %392 = vdwg.mxu0
        %v393 = vld [vmem:[%s278] sm:$0xf]
        %v394 = vpack.c.bf16 %v344, %v344
        %vm395 = vcmask 64512
        %v397 = vsel %vm395, %v393, 0
        %vm399 = vcmask 1043456
        %v401 = vsel %vm399, %v394, 0
        %403 = vmatprep.subr.bf16.mxu0 0
        %404 = vmatpush1.bf16.msra.mxu0 0
        %405 = vmatprep.subr.bf16.mxu0 0
        %406 = vmatpush1.bf16.msra.mxu0 0
        %407 = vmatprep.subr.bf16.mxu0 0
        %408 = vmatpush1.bf16.msra.mxu0 0
        %409 = vmatprep.subr.bf16.mxu0 0
        %410 = vmatpush1.bf16.msra.mxu0 0
        %411 = vmatprep.subr.bf16.mxu0 0
        %412 = vmatpush1.bf16.msra.mxu0 0
        %413 = vmatprep.subr.bf16.mxu0 0
        %414 = vmatpush1.bf16.msra.mxu0 0
        %415 = vmatprep.subr.bf16.mxu0 0
        %416 = vmatpush1.bf16.msra.mxu0 0
        %417 = vmatprep.subr.bf16.mxu0 0
        %418 = vmatpush1.bf16.msra.mxu0 %v401
        %419 = vmatprep.subr.bf16.mxu0 0
        %420 = vmatpush2.bf16.msra.mxu0 0
        %421 = vmatprep.subr.bf16.mxu0 0
        %422 = vmatpush2.bf16.msra.mxu0 0
        %423 = vmatprep.subr.bf16.mxu0 0
        %424 = vmatpush2.bf16.msra.mxu0 0
        %425 = vmatprep.subr.bf16.mxu0 0
        %426 = vmatpush2.bf16.msra.mxu0 0
        %427 = vmatprep.subr.bf16.mxu0 0
        %428 = vmatpush2.bf16.msra.mxu0 0
        %429 = vmatprep.subr.bf16.mxu0 0
        %430 = vmatpush2.bf16.msra.mxu0 0
        %431 = vmatprep.subr.bf16.mxu0 0
        %432 = vmatpush2.bf16.msra.mxu0 0
        %433 = vmatprep.subr.bf16.mxu0 0
        %434 = vmatpush2.bf16.msra.mxu0 0
        %435 = vmatprep.mubr.bf16.mxu0 0
        %436 = vmatmul.mubr.bf16.gmra.mxu0 %v397
        %v437 = vpop.f32.mrf.mxu0
        %v438 = vadd.f32 0.0, %v437
        %v439 = vpop.f32.mrf.mxu0
        %v440 = vpop.f32.mrf.mxu0
        %v441 = vpop.f32.mrf.mxu0
        %442 = vdwg.mxu0
        %v443 = vmax.f32 %v438, 0.0
        %s444 = scalar_lea.vmem %s278, 4
        %v445 = vld [vmem:[%s444] sm:$0xf]
        %v446 = vpack.c.bf16 %v346, %v346
        %v448 = vsel %vm395, %v445, 0
        %v451 = vsel %vm399, %v446, 0
        %453 = vmatprep.subr.bf16.mxu0 0
        %454 = vmatpush1.bf16.msra.mxu0 0
        %455 = vmatprep.subr.bf16.mxu0 0
        %456 = vmatpush1.bf16.msra.mxu0 0
        %457 = vmatprep.subr.bf16.mxu0 0
        %458 = vmatpush1.bf16.msra.mxu0 0
        %459 = vmatprep.subr.bf16.mxu0 0
        %460 = vmatpush1.bf16.msra.mxu0 0
        %461 = vmatprep.subr.bf16.mxu0 0
        %462 = vmatpush1.bf16.msra.mxu0 0
        %463 = vmatprep.subr.bf16.mxu0 0
        %464 = vmatpush1.bf16.msra.mxu0 0
        %465 = vmatprep.subr.bf16.mxu0 0
        %466 = vmatpush1.bf16.msra.mxu0 0
        %467 = vmatprep.subr.bf16.mxu0 0
        %468 = vmatpush1.bf16.msra.mxu0 %v451
        %469 = vmatprep.subr.bf16.mxu0 0
        %470 = vmatpush2.bf16.msra.mxu0 0
        %471 = vmatprep.subr.bf16.mxu0 0
        %472 = vmatpush2.bf16.msra.mxu0 0
        %473 = vmatprep.subr.bf16.mxu0 0
        %474 = vmatpush2.bf16.msra.mxu0 0
        %475 = vmatprep.subr.bf16.mxu0 0
        %476 = vmatpush2.bf16.msra.mxu0 0
        %477 = vmatprep.subr.bf16.mxu0 0
        %478 = vmatpush2.bf16.msra.mxu0 0
        %479 = vmatprep.subr.bf16.mxu0 0
        %480 = vmatpush2.bf16.msra.mxu0 0
        %481 = vmatprep.subr.bf16.mxu0 0
        %482 = vmatpush2.bf16.msra.mxu0 0
        %483 = vmatprep.subr.bf16.mxu0 0
        %484 = vmatpush2.bf16.msra.mxu0 0
        %485 = vmatprep.mubr.bf16.mxu0 0
        %486 = vmatmul.mubr.bf16.gmra.mxu0 %v448
        %v487 = vpop.f32.mrf.mxu0
        %v488 = vadd.f32 0.0, %v487
        %v489 = vpop.f32.mrf.mxu0
        %v490 = vpop.f32.mrf.mxu0
        %v491 = vpop.f32.mrf.mxu0
        %492 = vdwg.mxu0
        %v493 = vmax.f32 %v488, 0.0
        %v494 = vadd.f32 %v443, %v493
        %s495 = scalar_lea.vmem %s278, 8
        %v496 = vld [vmem:[%s495] sm:$0xf]
        %v497 = vpack.c.bf16 %v387, %v387
        %v499 = vsel %vm395, %v496, 0
        %v502 = vsel %vm399, %v497, 0
        %504 = vmatprep.subr.bf16.mxu0 0
        %505 = vmatpush1.bf16.msra.mxu0 0
        %506 = vmatprep.subr.bf16.mxu0 0
        %507 = vmatpush1.bf16.msra.mxu0 0
        %508 = vmatprep.subr.bf16.mxu0 0
        %509 = vmatpush1.bf16.msra.mxu0 0
        %510 = vmatprep.subr.bf16.mxu0 0
        %511 = vmatpush1.bf16.msra.mxu0 0
        %512 = vmatprep.subr.bf16.mxu0 0
        %513 = vmatpush1.bf16.msra.mxu0 0
        %514 = vmatprep.subr.bf16.mxu0 0
        %515 = vmatpush1.bf16.msra.mxu0 0
        %516 = vmatprep.subr.bf16.mxu0 0
        %517 = vmatpush1.bf16.msra.mxu0 0
        %518 = vmatprep.subr.bf16.mxu0 0
        %519 = vmatpush1.bf16.msra.mxu0 %v502
        %520 = vmatprep.subr.bf16.mxu0 0
        %521 = vmatpush2.bf16.msra.mxu0 0
        %522 = vmatprep.subr.bf16.mxu0 0
        %523 = vmatpush2.bf16.msra.mxu0 0
        %524 = vmatprep.subr.bf16.mxu0 0
        %525 = vmatpush2.bf16.msra.mxu0 0
        %526 = vmatprep.subr.bf16.mxu0 0
        %527 = vmatpush2.bf16.msra.mxu0 0
        %528 = vmatprep.subr.bf16.mxu0 0
        %529 = vmatpush2.bf16.msra.mxu0 0
        %530 = vmatprep.subr.bf16.mxu0 0
        %531 = vmatpush2.bf16.msra.mxu0 0
        %532 = vmatprep.subr.bf16.mxu0 0
        %533 = vmatpush2.bf16.msra.mxu0 0
        %534 = vmatprep.subr.bf16.mxu0 0
        %535 = vmatpush2.bf16.msra.mxu0 0
        %536 = vmatprep.mubr.bf16.mxu0 0
        %537 = vmatmul.mubr.bf16.gmra.mxu0 %v499
        %v538 = vpop.f32.mrf.mxu0
        %v539 = vadd.f32 0.0, %v538
        %v540 = vpop.f32.mrf.mxu0
        %v541 = vpop.f32.mrf.mxu0
        %v542 = vpop.f32.mrf.mxu0
        %543 = vdwg.mxu0
        %v544 = vmax.f32 %v539, 0.0
        %v545 = vadd.f32 %v494, %v544
        %s546 = scalar_lea.vmem %s278, 12
        %v547 = vld [vmem:[%s546] sm:$0xf]
        %v548 = vpack.c.bf16 %v348, %v348
        %v550 = vsel %vm395, %v547, 0
        %v553 = vsel %vm399, %v548, 0
        %555 = vmatprep.subr.bf16.mxu0 0
        %556 = vmatpush1.bf16.msra.mxu0 0
        %557 = vmatprep.subr.bf16.mxu0 0
        %558 = vmatpush1.bf16.msra.mxu0 0
        %559 = vmatprep.subr.bf16.mxu0 0
        %560 = vmatpush1.bf16.msra.mxu0 0
        %561 = vmatprep.subr.bf16.mxu0 0
        %562 = vmatpush1.bf16.msra.mxu0 0
        %563 = vmatprep.subr.bf16.mxu0 0
        %564 = vmatpush1.bf16.msra.mxu0 0
        %565 = vmatprep.subr.bf16.mxu0 0
        %566 = vmatpush1.bf16.msra.mxu0 0
        %567 = vmatprep.subr.bf16.mxu0 0
        %568 = vmatpush1.bf16.msra.mxu0 0
        %569 = vmatprep.subr.bf16.mxu0 0
        %570 = vmatpush1.bf16.msra.mxu0 %v553
        %571 = vmatprep.subr.bf16.mxu0 0
        %572 = vmatpush2.bf16.msra.mxu0 0
        %573 = vmatprep.subr.bf16.mxu0 0
        %574 = vmatpush2.bf16.msra.mxu0 0
        %575 = vmatprep.subr.bf16.mxu0 0
        %576 = vmatpush2.bf16.msra.mxu0 0
        %577 = vmatprep.subr.bf16.mxu0 0
        %578 = vmatpush2.bf16.msra.mxu0 0
        %579 = vmatprep.subr.bf16.mxu0 0
        %580 = vmatpush2.bf16.msra.mxu0 0
        %581 = vmatprep.subr.bf16.mxu0 0
        %582 = vmatpush2.bf16.msra.mxu0 0
        %583 = vmatprep.subr.bf16.mxu0 0
        %584 = vmatpush2.bf16.msra.mxu0 0
        %585 = vmatprep.subr.bf16.mxu0 0
        %586 = vmatpush2.bf16.msra.mxu0 0
        %587 = vmatprep.mubr.bf16.mxu0 0
        %588 = vmatmul.mubr.bf16.gmra.mxu0 %v550
        %v589 = vpop.f32.mrf.mxu0
        %v590 = vadd.f32 0.0, %v589
        %v591 = vpop.f32.mrf.mxu0
        %v592 = vpop.f32.mrf.mxu0
        %v593 = vpop.f32.mrf.mxu0
        %594 = vdwg.mxu0
        %v595 = vmax.f32 %v590, 0.0
        %s596 = scalar_lea.vmem %s278, 16
        %v597 = vld [vmem:[%s596] sm:$0xf]
        %v598 = vpack.c.bf16 %v350, %v350
        %v600 = vsel %vm395, %v597, 0
        %v603 = vsel %vm399, %v598, 0
        %605 = vmatprep.subr.bf16.mxu0 0
        %606 = vmatpush1.bf16.msra.mxu0 0
        %607 = vmatprep.subr.bf16.mxu0 0
        %608 = vmatpush1.bf16.msra.mxu0 0
        %609 = vmatprep.subr.bf16.mxu0 0
        %610 = vmatpush1.bf16.msra.mxu0 0
        %611 = vmatprep.subr.bf16.mxu0 0
        %612 = vmatpush1.bf16.msra.mxu0 0
        %613 = vmatprep.subr.bf16.mxu0 0
        %614 = vmatpush1.bf16.msra.mxu0 0
        %615 = vmatprep.subr.bf16.mxu0 0
        %616 = vmatpush1.bf16.msra.mxu0 0
        %617 = vmatprep.subr.bf16.mxu0 0
        %618 = vmatpush1.bf16.msra.mxu0 0
        %619 = vmatprep.subr.bf16.mxu0 0
        %620 = vmatpush1.bf16.msra.mxu0 %v603
        %621 = vmatprep.subr.bf16.mxu0 0
        %622 = vmatpush2.bf16.msra.mxu0 0
        %623 = vmatprep.subr.bf16.mxu0 0
        %624 = vmatpush2.bf16.msra.mxu0 0
        %625 = vmatprep.subr.bf16.mxu0 0
        %626 = vmatpush2.bf16.msra.mxu0 0
        %627 = vmatprep.subr.bf16.mxu0 0
        %628 = vmatpush2.bf16.msra.mxu0 0
        %629 = vmatprep.subr.bf16.mxu0 0
        %630 = vmatpush2.bf16.msra.mxu0 0
        %631 = vmatprep.subr.bf16.mxu0 0
        %632 = vmatpush2.bf16.msra.mxu0 0
        %633 = vmatprep.subr.bf16.mxu0 0
        %634 = vmatpush2.bf16.msra.mxu0 0
        %635 = vmatprep.subr.bf16.mxu0 0
        %636 = vmatpush2.bf16.msra.mxu0 0
        %637 = vmatprep.mubr.bf16.mxu0 0
        %638 = vmatmul.mubr.bf16.gmra.mxu0 %v600
        %v639 = vpop.f32.mrf.mxu0
        %v640 = vadd.f32 0.0, %v639
        %v641 = vpop.f32.mrf.mxu0
        %v642 = vpop.f32.mrf.mxu0
        %v643 = vpop.f32.mrf.mxu0
        %644 = vdwg.mxu0
        %v645 = vmax.f32 %v640, 0.0
        %v646 = vadd.f32 %v595, %v645
        %s647 = scalar_lea.vmem %s278, 20
        %v648 = vld [vmem:[%s647] sm:$0xf]
        %v649 = vpack.c.bf16 %v390, %v390
        %v651 = vsel %vm395, %v648, 0
        %v654 = vsel %vm399, %v649, 0
        %656 = vmatprep.subr.bf16.mxu0 0
        %657 = vmatpush1.bf16.msra.mxu0 0
        %658 = vmatprep.subr.bf16.mxu0 0
        %659 = vmatpush1.bf16.msra.mxu0 0
        %660 = vmatprep.subr.bf16.mxu0 0
        %661 = vmatpush1.bf16.msra.mxu0 0
        %662 = vmatprep.subr.bf16.mxu0 0
        %663 = vmatpush1.bf16.msra.mxu0 0
        %664 = vmatprep.subr.bf16.mxu0 0
        %665 = vmatpush1.bf16.msra.mxu0 0
        %666 = vmatprep.subr.bf16.mxu0 0
        %667 = vmatpush1.bf16.msra.mxu0 0
        %668 = vmatprep.subr.bf16.mxu0 0
        %669 = vmatpush1.bf16.msra.mxu0 0
        %670 = vmatprep.subr.bf16.mxu0 0
        %671 = vmatpush1.bf16.msra.mxu0 %v654
        %672 = vmatprep.subr.bf16.mxu0 0
        %673 = vmatpush2.bf16.msra.mxu0 0
        %674 = vmatprep.subr.bf16.mxu0 0
        %675 = vmatpush2.bf16.msra.mxu0 0
        %676 = vmatprep.subr.bf16.mxu0 0
        %677 = vmatpush2.bf16.msra.mxu0 0
        %678 = vmatprep.subr.bf16.mxu0 0
        %679 = vmatpush2.bf16.msra.mxu0 0
        %680 = vmatprep.subr.bf16.mxu0 0
        %681 = vmatpush2.bf16.msra.mxu0 0
        %682 = vmatprep.subr.bf16.mxu0 0
        %683 = vmatpush2.bf16.msra.mxu0 0
        %684 = vmatprep.subr.bf16.mxu0 0
        %685 = vmatpush2.bf16.msra.mxu0 0
        %686 = vmatprep.subr.bf16.mxu0 0
        %687 = vmatpush2.bf16.msra.mxu0 0
        %688 = vmatprep.mubr.bf16.mxu0 0
        %689 = vmatmul.mubr.bf16.gmra.mxu0 %v651
        %v690 = vpop.f32.mrf.mxu0
        %v691 = vadd.f32 0.0, %v690
        %v692 = vpop.f32.mrf.mxu0
        %v693 = vpop.f32.mrf.mxu0
        %v694 = vpop.f32.mrf.mxu0
        %695 = vdwg.mxu0
        %v696 = vmax.f32 %v691, 0.0
        %v697 = vadd.f32 %v646, %v696
        %v698 = vpack.c.bf16 %v697, %v545
        %v699 = vld [vmem:[#allocation2] sm:$0xff]
        %v700 = vld [vmem:[#allocation2 + $0x8] sm:$0xf]
        %v701 = vld [vmem:[#allocation2 + $0xc] sm:$0xff]
        %v702 = vld [vmem:[#allocation2 + $0x14] sm:$0xf]
        %v703 = vld [vmem:[#allocation2 + $0x18] sm:$0xff]
        %v704 = vld [vmem:[#allocation2 + $0x20] sm:$0xf]
        %v705 = vld [vmem:[#allocation2 + $0x24] sm:$0xff]
        %v706 = vld [vmem:[#allocation2 + $0x2c] sm:$0xf]
        %v707 = vld [vmem:[#allocation2 + $0x30] sm:$0xff]
        %v708 = vld [vmem:[#allocation2 + $0x38] sm:$0xf]
        %v709 = vld [vmem:[#allocation2 + $0x3c] sm:$0xff]
        %v710 = vld [vmem:[#allocation2 + $0x44] sm:$0xf]
        %v711 = vld [vmem:[#allocation2 + $0x48] sm:$0xff]
        %v712 = vld [vmem:[#allocation2 + $0x50] sm:$0xf]
        %v713 = vld [vmem:[#allocation2 + $0x54] sm:$0xff]
        %v714 = vld [vmem:[#allocation2 + $0x5c] sm:$0xf]
        %v715 = vld [vmem:[#allocation2 + $0x60] sm:$0xff]
        %v716 = vld [vmem:[#allocation2 + $0x68] sm:$0xf]
        %v717 = vld [vmem:[#allocation2 + $0x6c] sm:$0xff]
        %v718 = vld [vmem:[#allocation2 + $0x74] sm:$0xf]
        %v719 = vld [vmem:[#allocation2 + $0x78] sm:$0xff]
        %v720 = vld [vmem:[#allocation2 + $0x80] sm:$0xf]
        %v721 = vld [vmem:[#allocation2 + $0x84] sm:$0xff]
        %v722 = vld [vmem:[#allocation2 + $0x8c] sm:$0xf]
        %v723 = vld [vmem:[#allocation2 + $0x90] sm:$0xff]
        %v724 = vld [vmem:[#allocation2 + $0x98] sm:$0xf]
        %v725 = vld [vmem:[#allocation2 + $0x9c] sm:$0xff]
        %v726 = vld [vmem:[#allocation2 + $0xa4] sm:$0xf]
        %v727 = vld [vmem:[#allocation2 + $0xa8] sm:$0xff]
        %v728 = vld [vmem:[#allocation2 + $0xb0] sm:$0xf]
        %v729 = vld [vmem:[#allocation2 + $0xb4] sm:$0xff]
        %v730 = vld [vmem:[#allocation2 + $0xbc] sm:$0xf]
        %v763 = vunpack.c.l.b16 %v699
        %v764 = vunpack.c.h.b16 %v699
        %v765 = vunpack.c.l.b16 %v700
        %v766 = vunpack.c.l.b16 %v701
        %v767 = vunpack.c.h.b16 %v701
        %v768 = vunpack.c.l.b16 %v702
        %v769 = vunpack.c.l.b16 %v703
        %v770 = vunpack.c.h.b16 %v703
        %v771 = vunpack.c.l.b16 %v704
        %v772 = vunpack.c.l.b16 %v705
        %v773 = vunpack.c.h.b16 %v705
        %v774 = vunpack.c.l.b16 %v706
        %v775 = vunpack.c.l.b16 %v707
        %v776 = vunpack.c.h.b16 %v707
        %v777 = vunpack.c.l.b16 %v708
        %v778 = vunpack.c.l.b16 %v709
        %v779 = vunpack.c.h.b16 %v709
        %v780 = vunpack.c.l.b16 %v710
        %v781 = vunpack.c.l.b16 %v711
        %v782 = vunpack.c.h.b16 %v711
        %v783 = vunpack.c.l.b16 %v712
        %v784 = vunpack.c.l.b16 %v713
        %v785 = vunpack.c.h.b16 %v713
        %v786 = vunpack.c.l.b16 %v714
        %v787 = vunpack.c.l.b16 %v715
        %v788 = vunpack.c.h.b16 %v715
        %v789 = vunpack.c.l.b16 %v716
        %v790 = vunpack.c.l.b16 %v717
        %v791 = vunpack.c.h.b16 %v717
        %v792 = vunpack.c.l.b16 %v718
        %v793 = vunpack.c.l.b16 %v719
        %v794 = vunpack.c.h.b16 %v719
        %v795 = vunpack.c.l.b16 %v720
        %v796 = vunpack.c.l.b16 %v721
        %v797 = vunpack.c.h.b16 %v721
        %v798 = vunpack.c.l.b16 %v722
        %v799 = vunpack.c.l.b16 %v723
        %v800 = vunpack.c.h.b16 %v723
        %v801 = vunpack.c.l.b16 %v724
        %v802 = vunpack.c.l.b16 %v725
        %v803 = vunpack.c.h.b16 %v725
        %v804 = vunpack.c.l.b16 %v726
        %v805 = vunpack.c.l.b16 %v727
        %v806 = vunpack.c.h.b16 %v727
        %v807 = vunpack.c.l.b16 %v728
        %v808 = vunpack.c.l.b16 %v729
        %v809 = vunpack.c.h.b16 %v729
        %v810 = vunpack.c.l.b16 %v730
        %v811 = vpack.c.b16 %v766, %v763
        %v812 = vpack.c.b16 %v767, %v764
        %v813 = vpack.c.b16 %v768, %v765
        %v814 = vpack.c.b16 %v772, %v769
        %v815 = vpack.c.b16 %v773, %v770
        %v816 = vpack.c.b16 %v774, %v771
        %v817 = vpack.c.b16 %v778, %v775
        %v818 = vpack.c.b16 %v779, %v776
        %v819 = vpack.c.b16 %v780, %v777
        %v820 = vpack.c.b16 %v784, %v781
        %v821 = vpack.c.b16 %v785, %v782
        %v822 = vpack.c.b16 %v786, %v783
        %v823 = vpack.c.b16 %v790, %v787
        %v824 = vpack.c.b16 %v791, %v788
        %v825 = vpack.c.b16 %v792, %v789
        %v826 = vpack.c.b16 %v796, %v793
        %v827 = vpack.c.b16 %v797, %v794
        %v828 = vpack.c.b16 %v798, %v795
        %v829 = vpack.c.b16 %v802, %v799
        %v830 = vpack.c.b16 %v803, %v800
        %v831 = vpack.c.b16 %v804, %v801
        %v832 = vpack.c.b16 %v808, %v805
        %v833 = vpack.c.b16 %v809, %v806
        %v834 = vpack.c.b16 %v810, %v807
        %859 = vmatprep.subr.bf16.mxu0 %v833
        %860 = vmatpush1.bf16.msra.mxu0 %v832
        %861 = vmatprep.subr.bf16.mxu0 %v830
        %862 = vmatpush1.bf16.msra.mxu0 %v829
        %863 = vmatprep.subr.bf16.mxu0 %v827
        %864 = vmatpush1.bf16.msra.mxu0 %v826
        %865 = vmatprep.subr.bf16.mxu0 %v824
        %866 = vmatpush1.bf16.msra.mxu0 %v823
        %867 = vmatprep.subr.bf16.mxu0 %v821
        %868 = vmatpush1.bf16.msra.mxu0 %v820
        %869 = vmatprep.subr.bf16.mxu0 %v818
        %870 = vmatpush1.bf16.msra.mxu0 %v817
        %871 = vmatprep.subr.bf16.mxu0 %v815
        %872 = vmatpush1.bf16.msra.mxu0 %v814
        %873 = vmatprep.subr.bf16.mxu0 %v812
        %874 = vmatpush1.bf16.msra.mxu0 %v811
        %875 = vmatprep.subr.bf16.mxu0 0
        %876 = vmatpush2.bf16.msra.mxu0 0
        %877 = vmatprep.subr.bf16.mxu0 0
        %878 = vmatpush2.bf16.msra.mxu0 0
        %879 = vmatprep.subr.bf16.mxu0 0
        %880 = vmatpush2.bf16.msra.mxu0 0
        %881 = vmatprep.subr.bf16.mxu0 0
        %882 = vmatpush2.bf16.msra.mxu0 0
        %883 = vmatprep.subr.bf16.mxu0 0
        %884 = vmatpush2.bf16.msra.mxu0 0
        %885 = vmatprep.subr.bf16.mxu0 0
        %886 = vmatpush2.bf16.msra.mxu0 0
        %887 = vmatprep.subr.bf16.mxu0 0
        %888 = vmatpush2.bf16.msra.mxu0 0
        %889 = vmatprep.subr.bf16.mxu0 0
        %890 = vmatpush2.bf16.msra.mxu0 0
        %891 = vmatprep.mubr.bf16.mxu0 0
        %892 = vmatmul.mubr.bf16.gmra.mxu0 %v698
        %v893 = vpop.f32.mrf.mxu0
        %v894 = vadd.f32 0.0, %v893
        %v895 = vpop.f32.mrf.mxu0
        %v896 = vadd.f32 0.0, %v895
        %v897 = vpop.f32.mrf.mxu0
        %v898 = vadd.f32 0.0, %v897
        %v899 = vpop.f32.mrf.mxu0
        %v900 = vadd.f32 0.0, %v899
        %901 = vdwg.mxu0
        %902 = vmatprep.subr.bf16.mxu0 0
        %903 = vmatpush1.bf16.msra.mxu0 %v834
        %904 = vmatprep.subr.bf16.mxu0 0
        %905 = vmatpush1.bf16.msra.mxu0 %v831
        %906 = vmatprep.subr.bf16.mxu0 0
        %907 = vmatpush1.bf16.msra.mxu0 %v828
        %908 = vmatprep.subr.bf16.mxu0 0
        %909 = vmatpush1.bf16.msra.mxu0 %v825
        %910 = vmatprep.subr.bf16.mxu0 0
        %911 = vmatpush1.bf16.msra.mxu0 %v822
        %912 = vmatprep.subr.bf16.mxu0 0
        %913 = vmatpush1.bf16.msra.mxu0 %v819
        %914 = vmatprep.subr.bf16.mxu0 0
        %915 = vmatpush1.bf16.msra.mxu0 %v816
        %916 = vmatprep.subr.bf16.mxu0 0
        %917 = vmatpush1.bf16.msra.mxu0 %v813
        %918 = vmatprep.subr.bf16.mxu0 0
        %919 = vmatpush2.bf16.msra.mxu0 0
        %920 = vmatprep.subr.bf16.mxu0 0
        %921 = vmatpush2.bf16.msra.mxu0 0
        %922 = vmatprep.subr.bf16.mxu0 0
        %923 = vmatpush2.bf16.msra.mxu0 0
        %924 = vmatprep.subr.bf16.mxu0 0
        %925 = vmatpush2.bf16.msra.mxu0 0
        %926 = vmatprep.subr.bf16.mxu0 0
        %927 = vmatpush2.bf16.msra.mxu0 0
        %928 = vmatprep.subr.bf16.mxu0 0
        %929 = vmatpush2.bf16.msra.mxu0 0
        %930 = vmatprep.subr.bf16.mxu0 0
        %931 = vmatpush2.bf16.msra.mxu0 0
        %932 = vmatprep.subr.bf16.mxu0 0
        %933 = vmatpush2.bf16.msra.mxu0 0
        %934 = vmatprep.mubr.bf16.mxu0 0
        %935 = vmatmul.mubr.bf16.gmra.mxu0 %v698
        %v936 = vpop.f32.mrf.mxu0
        %v937 = vadd.f32 0.0, %v936
        %v938 = vpop.f32.mrf.mxu0
        %v939 = vpop.f32.mrf.mxu0
        %v940 = vadd.f32 0.0, %v939
        %v941 = vpop.f32.mrf.mxu0
        %942 = vdwg.mxu0
        %v943 = vpack.c.bf16 %v894, %v894
        %v945 = vsel %vm399, %v943, 0
        %947 = vmatprep.subr.bf16.mxu0 0
        %948 = vmatpush1.bf16.msra.mxu0 0
        %949 = vmatprep.subr.bf16.mxu0 0
        %950 = vmatpush1.bf16.msra.mxu0 0
        %951 = vmatprep.subr.bf16.mxu0 0
        %952 = vmatpush1.bf16.msra.mxu0 0
        %953 = vmatprep.subr.bf16.mxu0 0
        %954 = vmatpush1.bf16.msra.mxu0 0
        %955 = vmatprep.subr.bf16.mxu0 0
        %956 = vmatpush1.bf16.msra.mxu0 0
        %957 = vmatprep.subr.bf16.mxu0 0
        %958 = vmatpush1.bf16.msra.mxu0 0
        %959 = vmatprep.subr.bf16.mxu0 0
        %960 = vmatpush1.bf16.msra.mxu0 0
        %961 = vmatprep.subr.bf16.mxu0 0
        %962 = vmatpush1.bf16.msra.mxu0 %v945
        %963 = vmatprep.subr.bf16.mxu0 0
        %964 = vmatpush2.bf16.msra.mxu0 0
        %965 = vmatprep.subr.bf16.mxu0 0
        %966 = vmatpush2.bf16.msra.mxu0 0
        %967 = vmatprep.subr.bf16.mxu0 0
        %968 = vmatpush2.bf16.msra.mxu0 0
        %969 = vmatprep.subr.bf16.mxu0 0
        %970 = vmatpush2.bf16.msra.mxu0 0
        %971 = vmatprep.subr.bf16.mxu0 0
        %972 = vmatpush2.bf16.msra.mxu0 0
        %973 = vmatprep.subr.bf16.mxu0 0
        %974 = vmatpush2.bf16.msra.mxu0 0
        %975 = vmatprep.subr.bf16.mxu0 0
        %976 = vmatpush2.bf16.msra.mxu0 0
        %977 = vmatprep.subr.bf16.mxu0 0
        %978 = vmatpush2.bf16.msra.mxu0 0
        %979 = vmatprep.mubr.bf16.mxu0 0
        %980 = vmatmul.mubr.bf16.gmra.mxu0 %v397
        %v981 = vpop.f32.mrf.mxu0
        %v982 = vadd.f32 0.0, %v981
        %v983 = vpop.f32.mrf.mxu0
        %v984 = vpop.f32.mrf.mxu0
        %v985 = vpop.f32.mrf.mxu0
        %986 = vdwg.mxu0
        %v987 = vmax.f32 %v982, 0.0
        %v988 = vpack.c.bf16 %v896, %v896
        %v990 = vsel %vm399, %v988, 0
        %992 = vmatprep.subr.bf16.mxu0 0
        %993 = vmatpush1.bf16.msra.mxu0 0
        %994 = vmatprep.subr.bf16.mxu0 0
        %995 = vmatpush1.bf16.msra.mxu0 0
        %996 = vmatprep.subr.bf16.mxu0 0
        %997 = vmatpush1.bf16.msra.mxu0 0
        %998 = vmatprep.subr.bf16.mxu0 0
        %999 = vmatpush1.bf16.msra.mxu0 0
        %1000 = vmatprep.subr.bf16.mxu0 0
        %1001 = vmatpush1.bf16.msra.mxu0 0
        %1002 = vmatprep.subr.bf16.mxu0 0
        %1003 = vmatpush1.bf16.msra.mxu0 0
        %1004 = vmatprep.subr.bf16.mxu0 0
        %1005 = vmatpush1.bf16.msra.mxu0 0
        %1006 = vmatprep.subr.bf16.mxu0 0
        %1007 = vmatpush1.bf16.msra.mxu0 %v990
        %1008 = vmatprep.subr.bf16.mxu0 0
        %1009 = vmatpush2.bf16.msra.mxu0 0
        %1010 = vmatprep.subr.bf16.mxu0 0
        %1011 = vmatpush2.bf16.msra.mxu0 0
        %1012 = vmatprep.subr.bf16.mxu0 0
        %1013 = vmatpush2.bf16.msra.mxu0 0
        %1014 = vmatprep.subr.bf16.mxu0 0
        %1015 = vmatpush2.bf16.msra.mxu0 0
        %1016 = vmatprep.subr.bf16.mxu0 0
        %1017 = vmatpush2.bf16.msra.mxu0 0
        %1018 = vmatprep.subr.bf16.mxu0 0
        %1019 = vmatpush2.bf16.msra.mxu0 0
        %1020 = vmatprep.subr.bf16.mxu0 0
        %1021 = vmatpush2.bf16.msra.mxu0 0
        %1022 = vmatprep.subr.bf16.mxu0 0
        %1023 = vmatpush2.bf16.msra.mxu0 0
        %1024 = vmatprep.mubr.bf16.mxu0 0
        %1025 = vmatmul.mubr.bf16.gmra.mxu0 %v448
        %v1026 = vpop.f32.mrf.mxu0
        %v1027 = vadd.f32 0.0, %v1026
        %v1028 = vpop.f32.mrf.mxu0
        %v1029 = vpop.f32.mrf.mxu0
        %v1030 = vpop.f32.mrf.mxu0
        %1031 = vdwg.mxu0
        %v1032 = vmax.f32 %v1027, 0.0
        %v1033 = vadd.f32 %v987, %v1032
        %v1034 = vpack.c.bf16 %v937, %v937
        %v1036 = vsel %vm399, %v1034, 0
        %1038 = vmatprep.subr.bf16.mxu0 0
        %1039 = vmatpush1.bf16.msra.mxu0 0
        %1040 = vmatprep.subr.bf16.mxu0 0
        %1041 = vmatpush1.bf16.msra.mxu0 0
        %1042 = vmatprep.subr.bf16.mxu0 0
        %1043 = vmatpush1.bf16.msra.mxu0 0
        %1044 = vmatprep.subr.bf16.mxu0 0
        %1045 = vmatpush1.bf16.msra.mxu0 0
        %1046 = vmatprep.subr.bf16.mxu0 0
        %1047 = vmatpush1.bf16.msra.mxu0 0
        %1048 = vmatprep.subr.bf16.mxu0 0
        %1049 = vmatpush1.bf16.msra.mxu0 0
        %1050 = vmatprep.subr.bf16.mxu0 0
        %1051 = vmatpush1.bf16.msra.mxu0 0
        %1052 = vmatprep.subr.bf16.mxu0 0
        %1053 = vmatpush1.bf16.msra.mxu0 %v1036
        %1054 = vmatprep.subr.bf16.mxu0 0
        %1055 = vmatpush2.bf16.msra.mxu0 0
        %1056 = vmatprep.subr.bf16.mxu0 0
        %1057 = vmatpush2.bf16.msra.mxu0 0
        %1058 = vmatprep.subr.bf16.mxu0 0
        %1059 = vmatpush2.bf16.msra.mxu0 0
        %1060 = vmatprep.subr.bf16.mxu0 0
        %1061 = vmatpush2.bf16.msra.mxu0 0
        %1062 = vmatprep.subr.bf16.mxu0 0
        %1063 = vmatpush2.bf16.msra.mxu0 0
        %1064 = vmatprep.subr.bf16.mxu0 0
        %1065 = vmatpush2.bf16.msra.mxu0 0
        %1066 = vmatprep.subr.bf16.mxu0 0
        %1067 = vmatpush2.bf16.msra.mxu0 0
        %1068 = vmatprep.subr.bf16.mxu0 0
        %1069 = vmatpush2.bf16.msra.mxu0 0
        %1070 = vmatprep.mubr.bf16.mxu0 0
        %1071 = vmatmul.mubr.bf16.gmra.mxu0 %v499
        %v1072 = vpop.f32.mrf.mxu0
        %v1073 = vadd.f32 0.0, %v1072
        %v1074 = vpop.f32.mrf.mxu0
        %v1075 = vpop.f32.mrf.mxu0
        %v1076 = vpop.f32.mrf.mxu0
        %1077 = vdwg.mxu0
        %v1078 = vmax.f32 %v1073, 0.0
        %v1079 = vadd.f32 %v1033, %v1078
        %v1080 = vpack.c.bf16 %v898, %v898
        %v1082 = vsel %vm399, %v1080, 0
        %1084 = vmatprep.subr.bf16.mxu0 0
        %1085 = vmatpush1.bf16.msra.mxu0 0
        %1086 = vmatprep.subr.bf16.mxu0 0
        %1087 = vmatpush1.bf16.msra.mxu0 0
        %1088 = vmatprep.subr.bf16.mxu0 0
        %1089 = vmatpush1.bf16.msra.mxu0 0
        %1090 = vmatprep.subr.bf16.mxu0 0
        %1091 = vmatpush1.bf16.msra.mxu0 0
        %1092 = vmatprep.subr.bf16.mxu0 0
        %1093 = vmatpush1.bf16.msra.mxu0 0
        %1094 = vmatprep.subr.bf16.mxu0 0
        %1095 = vmatpush1.bf16.msra.mxu0 0
        %1096 = vmatprep.subr.bf16.mxu0 0
        %1097 = vmatpush1.bf16.msra.mxu0 0
        %1098 = vmatprep.subr.bf16.mxu0 0
        %1099 = vmatpush1.bf16.msra.mxu0 %v1082
        %1100 = vmatprep.subr.bf16.mxu0 0
        %1101 = vmatpush2.bf16.msra.mxu0 0
        %1102 = vmatprep.subr.bf16.mxu0 0
        %1103 = vmatpush2.bf16.msra.mxu0 0
        %1104 = vmatprep.subr.bf16.mxu0 0
        %1105 = vmatpush2.bf16.msra.mxu0 0
        %1106 = vmatprep.subr.bf16.mxu0 0
        %1107 = vmatpush2.bf16.msra.mxu0 0
        %1108 = vmatprep.subr.bf16.mxu0 0
        %1109 = vmatpush2.bf16.msra.mxu0 0
        %1110 = vmatprep.subr.bf16.mxu0 0
        %1111 = vmatpush2.bf16.msra.mxu0 0
        %1112 = vmatprep.subr.bf16.mxu0 0
        %1113 = vmatpush2.bf16.msra.mxu0 0
        %1114 = vmatprep.subr.bf16.mxu0 0
        %1115 = vmatpush2.bf16.msra.mxu0 0
        %1116 = vmatprep.mubr.bf16.mxu0 0
        %1117 = vmatmul.mubr.bf16.gmra.mxu0 %v550
        %v1118 = vpop.f32.mrf.mxu0
        %v1119 = vadd.f32 0.0, %v1118
        %v1120 = vpop.f32.mrf.mxu0
        %v1121 = vpop.f32.mrf.mxu0
        %v1122 = vpop.f32.mrf.mxu0
        %1123 = vdwg.mxu0
        %v1124 = vmax.f32 %v1119, 0.0
        %v1125 = vpack.c.bf16 %v900, %v900
        %v1127 = vsel %vm399, %v1125, 0
        %1129 = vmatprep.subr.bf16.mxu0 0
        %1130 = vmatpush1.bf16.msra.mxu0 0
        %1131 = vmatprep.subr.bf16.mxu0 0
        %1132 = vmatpush1.bf16.msra.mxu0 0
        %1133 = vmatprep.subr.bf16.mxu0 0
        %1134 = vmatpush1.bf16.msra.mxu0 0
        %1135 = vmatprep.subr.bf16.mxu0 0
        %1136 = vmatpush1.bf16.msra.mxu0 0
        %1137 = vmatprep.subr.bf16.mxu0 0
        %1138 = vmatpush1.bf16.msra.mxu0 0
        %1139 = vmatprep.subr.bf16.mxu0 0
        %1140 = vmatpush1.bf16.msra.mxu0 0
        %1141 = vmatprep.subr.bf16.mxu0 0
        %1142 = vmatpush1.bf16.msra.mxu0 0
        %1143 = vmatprep.subr.bf16.mxu0 0
        %1144 = vmatpush1.bf16.msra.mxu0 %v1127
        %1145 = vmatprep.subr.bf16.mxu0 0
        %1146 = vmatpush2.bf16.msra.mxu0 0
        %1147 = vmatprep.subr.bf16.mxu0 0
        %1148 = vmatpush2.bf16.msra.mxu0 0
        %1149 = vmatprep.subr.bf16.mxu0 0
        %1150 = vmatpush2.bf16.msra.mxu0 0
        %1151 = vmatprep.subr.bf16.mxu0 0
        %1152 = vmatpush2.bf16.msra.mxu0 0
        %1153 = vmatprep.subr.bf16.mxu0 0
        %1154 = vmatpush2.bf16.msra.mxu0 0
        %1155 = vmatprep.subr.bf16.mxu0 0
        %1156 = vmatpush2.bf16.msra.mxu0 0
        %1157 = vmatprep.subr.bf16.mxu0 0
        %1158 = vmatpush2.bf16.msra.mxu0 0
        %1159 = vmatprep.subr.bf16.mxu0 0
        %1160 = vmatpush2.bf16.msra.mxu0 0
        %1161 = vmatprep.mubr.bf16.mxu0 0
        %1162 = vmatmul.mubr.bf16.gmra.mxu0 %v600
        %v1163 = vpop.f32.mrf.mxu0
        %v1164 = vadd.f32 0.0, %v1163
        %v1165 = vpop.f32.mrf.mxu0
        %v1166 = vpop.f32.mrf.mxu0
        %v1167 = vpop.f32.mrf.mxu0
        %1168 = vdwg.mxu0
        %v1169 = vmax.f32 %v1164, 0.0
        %v1170 = vadd.f32 %v1124, %v1169
        %v1171 = vpack.c.bf16 %v940, %v940
        %v1173 = vsel %vm399, %v1171, 0
        %1175 = vmatprep.subr.bf16.mxu0 0
        %1176 = vmatpush1.bf16.msra.mxu0 0
        %1177 = vmatprep.subr.bf16.mxu0 0
        %1178 = vmatpush1.bf16.msra.mxu0 0
        %1179 = vmatprep.subr.bf16.mxu0 0
        %1180 = vmatpush1.bf16.msra.mxu0 0
        %1181 = vmatprep.subr.bf16.mxu0 0
        %1182 = vmatpush1.bf16.msra.mxu0 0
        %1183 = vmatprep.subr.bf16.mxu0 0
        %1184 = vmatpush1.bf16.msra.mxu0 0
        %1185 = vmatprep.subr.bf16.mxu0 0
        %1186 = vmatpush1.bf16.msra.mxu0 0
        %1187 = vmatprep.subr.bf16.mxu0 0
        %1188 = vmatpush1.bf16.msra.mxu0 0
        %1189 = vmatprep.subr.bf16.mxu0 0
        %1190 = vmatpush1.bf16.msra.mxu0 %v1173
        %1191 = vmatprep.subr.bf16.mxu0 0
        %1192 = vmatpush2.bf16.msra.mxu0 0
        %1193 = vmatprep.subr.bf16.mxu0 0
        %1194 = vmatpush2.bf16.msra.mxu0 0
        %1195 = vmatprep.subr.bf16.mxu0 0
        %1196 = vmatpush2.bf16.msra.mxu0 0
        %1197 = vmatprep.subr.bf16.mxu0 0
        %1198 = vmatpush2.bf16.msra.mxu0 0
        %1199 = vmatprep.subr.bf16.mxu0 0
        %1200 = vmatpush2.bf16.msra.mxu0 0
        %1201 = vmatprep.subr.bf16.mxu0 0
        %1202 = vmatpush2.bf16.msra.mxu0 0
        %1203 = vmatprep.subr.bf16.mxu0 0
        %1204 = vmatpush2.bf16.msra.mxu0 0
        %1205 = vmatprep.subr.bf16.mxu0 0
        %1206 = vmatpush2.bf16.msra.mxu0 0
        %1207 = vmatprep.mubr.bf16.mxu0 0
        %1208 = vmatmul.mubr.bf16.gmra.mxu0 %v651
        %v1209 = vpop.f32.mrf.mxu0
        %v1210 = vadd.f32 0.0, %v1209
        %v1211 = vpop.f32.mrf.mxu0
        %v1212 = vpop.f32.mrf.mxu0
        %v1213 = vpop.f32.mrf.mxu0
        %1214 = vdwg.mxu0
        %v1215 = vmax.f32 %v1210, 0.0
        %v1216 = vadd.f32 %v1170, %v1215
        %v1217 = vpack.c.bf16 %v1216, %v1079
        %v1218 = vld [vmem:[#allocation5] sm:$0xff]
        %v1219 = vld [vmem:[#allocation5 + $0x8] sm:$0xf]
        %v1220 = vld [vmem:[#allocation5 + $0xc] sm:$0xff]
        %v1221 = vld [vmem:[#allocation5 + $0x14] sm:$0xf]
        %v1222 = vld [vmem:[#allocation5 + $0x18] sm:$0xff]
        %v1223 = vld [vmem:[#allocation5 + $0x20] sm:$0xf]
        %v1224 = vld [vmem:[#allocation5 + $0x24] sm:$0xff]
        %v1225 = vld [vmem:[#allocation5 + $0x2c] sm:$0xf]
        %v1226 = vld [vmem:[#allocation5 + $0x30] sm:$0xff]
        %v1227 = vld [vmem:[#allocation5 + $0x38] sm:$0xf]
        %v1228 = vld [vmem:[#allocation5 + $0x3c] sm:$0xff]
        %v1229 = vld [vmem:[#allocation5 + $0x44] sm:$0xf]
        %v1230 = vld [vmem:[#allocation5 + $0x48] sm:$0xff]
        %v1231 = vld [vmem:[#allocation5 + $0x50] sm:$0xf]
        %v1232 = vld [vmem:[#allocation5 + $0x54] sm:$0xff]
        %v1233 = vld [vmem:[#allocation5 + $0x5c] sm:$0xf]
        %v1234 = vld [vmem:[#allocation5 + $0x60] sm:$0xff]
        %v1235 = vld [vmem:[#allocation5 + $0x68] sm:$0xf]
        %v1236 = vld [vmem:[#allocation5 + $0x6c] sm:$0xff]
        %v1237 = vld [vmem:[#allocation5 + $0x74] sm:$0xf]
        %v1238 = vld [vmem:[#allocation5 + $0x78] sm:$0xff]
        %v1239 = vld [vmem:[#allocation5 + $0x80] sm:$0xf]
        %v1240 = vld [vmem:[#allocation5 + $0x84] sm:$0xff]
        %v1241 = vld [vmem:[#allocation5 + $0x8c] sm:$0xf]
        %v1242 = vld [vmem:[#allocation5 + $0x90] sm:$0xff]
        %v1243 = vld [vmem:[#allocation5 + $0x98] sm:$0xf]
        %v1244 = vld [vmem:[#allocation5 + $0x9c] sm:$0xff]
        %v1245 = vld [vmem:[#allocation5 + $0xa4] sm:$0xf]
        %v1246 = vld [vmem:[#allocation5 + $0xa8] sm:$0xff]
        %v1247 = vld [vmem:[#allocation5 + $0xb0] sm:$0xf]
        %v1248 = vld [vmem:[#allocation5 + $0xb4] sm:$0xff]
        %v1249 = vld [vmem:[#allocation5 + $0xbc] sm:$0xf]
        %v1282 = vunpack.c.l.b16 %v1218
        %v1283 = vunpack.c.h.b16 %v1218
        %v1284 = vunpack.c.l.b16 %v1219
        %v1285 = vunpack.c.l.b16 %v1220
        %v1286 = vunpack.c.h.b16 %v1220
        %v1287 = vunpack.c.l.b16 %v1221
        %v1288 = vunpack.c.l.b16 %v1222
        %v1289 = vunpack.c.h.b16 %v1222
        %v1290 = vunpack.c.l.b16 %v1223
        %v1291 = vunpack.c.l.b16 %v1224
        %v1292 = vunpack.c.h.b16 %v1224
        %v1293 = vunpack.c.l.b16 %v1225
        %v1294 = vunpack.c.l.b16 %v1226
        %v1295 = vunpack.c.h.b16 %v1226
        %v1296 = vunpack.c.l.b16 %v1227
        %v1297 = vunpack.c.l.b16 %v1228
        %v1298 = vunpack.c.h.b16 %v1228
        %v1299 = vunpack.c.l.b16 %v1229
        %v1300 = vunpack.c.l.b16 %v1230
        %v1301 = vunpack.c.h.b16 %v1230
        %v1302 = vunpack.c.l.b16 %v1231
        %v1303 = vunpack.c.l.b16 %v1232
        %v1304 = vunpack.c.h.b16 %v1232
        %v1305 = vunpack.c.l.b16 %v1233
        %v1306 = vunpack.c.l.b16 %v1234
        %v1307 = vunpack.c.h.b16 %v1234
        %v1308 = vunpack.c.l.b16 %v1235
        %v1309 = vunpack.c.l.b16 %v1236
        %v1310 = vunpack.c.h.b16 %v1236
        %v1311 = vunpack.c.l.b16 %v1237
        %v1312 = vunpack.c.l.b16 %v1238
        %v1313 = vunpack.c.h.b16 %v1238
        %v1314 = vunpack.c.l.b16 %v1239
        %v1315 = vunpack.c.l.b16 %v1240
        %v1316 = vunpack.c.h.b16 %v1240
        %v1317 = vunpack.c.l.b16 %v1241
        %v1318 = vunpack.c.l.b16 %v1242
        %v1319 = vunpack.c.h.b16 %v1242
        %v1320 = vunpack.c.l.b16 %v1243
        %v1321 = vunpack.c.l.b16 %v1244
        %v1322 = vunpack.c.h.b16 %v1244
        %v1323 = vunpack.c.l.b16 %v1245
        %v1324 = vunpack.c.l.b16 %v1246
        %v1325 = vunpack.c.h.b16 %v1246
        %v1326 = vunpack.c.l.b16 %v1247
        %v1327 = vunpack.c.l.b16 %v1248
        %v1328 = vunpack.c.h.b16 %v1248
        %v1329 = vunpack.c.l.b16 %v1249
        %v1330 = vpack.c.b16 %v1285, %v1282
        %v1331 = vpack.c.b16 %v1286, %v1283
        %v1332 = vpack.c.b16 %v1287, %v1284
        %v1333 = vpack.c.b16 %v1291, %v1288
        %v1334 = vpack.c.b16 %v1292, %v1289
        %v1335 = vpack.c.b16 %v1293, %v1290
        %v1336 = vpack.c.b16 %v1297, %v1294
        %v1337 = vpack.c.b16 %v1298, %v1295
        %v1338 = vpack.c.b16 %v1299, %v1296
        %v1339 = vpack.c.b16 %v1303, %v1300
        %v1340 = vpack.c.b16 %v1304, %v1301
        %v1341 = vpack.c.b16 %v1305, %v1302
        %v1342 = vpack.c.b16 %v1309, %v1306
        %v1343 = vpack.c.b16 %v1310, %v1307
        %v1344 = vpack.c.b16 %v1311, %v1308
        %v1345 = vpack.c.b16 %v1315, %v1312
        %v1346 = vpack.c.b16 %v1316, %v1313
        %v1347 = vpack.c.b16 %v1317, %v1314
        %v1348 = vpack.c.b16 %v1321, %v1318
        %v1349 = vpack.c.b16 %v1322, %v1319
        %v1350 = vpack.c.b16 %v1323, %v1320
        %v1351 = vpack.c.b16 %v1327, %v1324
        %v1352 = vpack.c.b16 %v1328, %v1325
        %v1353 = vpack.c.b16 %v1329, %v1326
        %1378 = vmatprep.subr.bf16.mxu0 %v1352
        %1379 = vmatpush1.bf16.msra.mxu0 %v1351
        %1380 = vmatprep.subr.bf16.mxu0 %v1349
        %1381 = vmatpush1.bf16.msra.mxu0 %v1348
        %1382 = vmatprep.subr.bf16.mxu0 %v1346
        %1383 = vmatpush1.bf16.msra.mxu0 %v1345
        %1384 = vmatprep.subr.bf16.mxu0 %v1343
        %1385 = vmatpush1.bf16.msra.mxu0 %v1342
        %1386 = vmatprep.subr.bf16.mxu0 %v1340
        %1387 = vmatpush1.bf16.msra.mxu0 %v1339
        %1388 = vmatprep.subr.bf16.mxu0 %v1337
        %1389 = vmatpush1.bf16.msra.mxu0 %v1336
        %1390 = vmatprep.subr.bf16.mxu0 %v1334
        %1391 = vmatpush1.bf16.msra.mxu0 %v1333
        %1392 = vmatprep.subr.bf16.mxu0 %v1331
        %1393 = vmatpush1.bf16.msra.mxu0 %v1330
        %1394 = vmatprep.subr.bf16.mxu0 0
        %1395 = vmatpush2.bf16.msra.mxu0 0
        %1396 = vmatprep.subr.bf16.mxu0 0
        %1397 = vmatpush2.bf16.msra.mxu0 0
        %1398 = vmatprep.subr.bf16.mxu0 0
        %1399 = vmatpush2.bf16.msra.mxu0 0
        %1400 = vmatprep.subr.bf16.mxu0 0
        %1401 = vmatpush2.bf16.msra.mxu0 0
        %1402 = vmatprep.subr.bf16.mxu0 0
        %1403 = vmatpush2.bf16.msra.mxu0 0
        %1404 = vmatprep.subr.bf16.mxu0 0
        %1405 = vmatpush2.bf16.msra.mxu0 0
        %1406 = vmatprep.subr.bf16.mxu0 0
        %1407 = vmatpush2.bf16.msra.mxu0 0
        %1408 = vmatprep.subr.bf16.mxu0 0
        %1409 = vmatpush2.bf16.msra.mxu0 0
        %1410 = vmatprep.mubr.bf16.mxu0 0
        %1411 = vmatmul.mubr.bf16.gmra.mxu0 %v1217
        %v1412 = vpop.f32.mrf.mxu0
        %v1413 = vadd.f32 0.0, %v1412
        %v1414 = vpop.f32.mrf.mxu0
        %v1415 = vadd.f32 0.0, %v1414
        %v1416 = vpop.f32.mrf.mxu0
        %v1417 = vadd.f32 0.0, %v1416
        %v1418 = vpop.f32.mrf.mxu0
        %v1419 = vadd.f32 0.0, %v1418
        %1420 = vdwg.mxu0
        %1421 = vmatprep.subr.bf16.mxu0 0
        %1422 = vmatpush1.bf16.msra.mxu0 %v1353
        %1423 = vmatprep.subr.bf16.mxu0 0
        %1424 = vmatpush1.bf16.msra.mxu0 %v1350
        %1425 = vmatprep.subr.bf16.mxu0 0
        %1426 = vmatpush1.bf16.msra.mxu0 %v1347
        %1427 = vmatprep.subr.bf16.mxu0 0
        %1428 = vmatpush1.bf16.msra.mxu0 %v1344
        %1429 = vmatprep.subr.bf16.mxu0 0
        %1430 = vmatpush1.bf16.msra.mxu0 %v1341
        %1431 = vmatprep.subr.bf16.mxu0 0
        %1432 = vmatpush1.bf16.msra.mxu0 %v1338
        %1433 = vmatprep.subr.bf16.mxu0 0
        %1434 = vmatpush1.bf16.msra.mxu0 %v1335
        %1435 = vmatprep.subr.bf16.mxu0 0
        %1436 = vmatpush1.bf16.msra.mxu0 %v1332
        %1437 = vmatprep.subr.bf16.mxu0 0
        %1438 = vmatpush2.bf16.msra.mxu0 0
        %1439 = vmatprep.subr.bf16.mxu0 0
        %1440 = vmatpush2.bf16.msra.mxu0 0
        %1441 = vmatprep.subr.bf16.mxu0 0
        %1442 = vmatpush2.bf16.msra.mxu0 0
        %1443 = vmatprep.subr.bf16.mxu0 0
        %1444 = vmatpush2.bf16.msra.mxu0 0
        %1445 = vmatprep.subr.bf16.mxu0 0
        %1446 = vmatpush2.bf16.msra.mxu0 0
        %1447 = vmatprep.subr.bf16.mxu0 0
        %1448 = vmatpush2.bf16.msra.mxu0 0
        %1449 = vmatprep.subr.bf16.mxu0 0
        %1450 = vmatpush2.bf16.msra.mxu0 0
        %1451 = vmatprep.subr.bf16.mxu0 0
        %1452 = vmatpush2.bf16.msra.mxu0 0
        %1453 = vmatprep.mubr.bf16.mxu0 0
        %1454 = vmatmul.mubr.bf16.gmra.mxu0 %v1217
        %v1455 = vpop.f32.mrf.mxu0
        %v1456 = vadd.f32 0.0, %v1455
        %v1457 = vpop.f32.mrf.mxu0
        %v1458 = vpop.f32.mrf.mxu0
        %v1459 = vadd.f32 0.0, %v1458
        %v1460 = vpop.f32.mrf.mxu0
        %1461 = vdwg.mxu0
        %v1462 = vpack.c.bf16 %v1413, %v1413
        %v1463 = vpack.c.bf16 %v1415, %v1415
        %v1465 = vsel %vm399, %v1463, 0
        %1467 = vmatprep.subr.bf16.mxu0 0
        %1468 = vmatpush1.bf16.msra.mxu0 0
        %1469 = vmatprep.subr.bf16.mxu0 0
        %1470 = vmatpush1.bf16.msra.mxu0 0
        %1471 = vmatprep.subr.bf16.mxu0 0
        %1472 = vmatpush1.bf16.msra.mxu0 0
        %1473 = vmatprep.subr.bf16.mxu0 0
        %1474 = vmatpush1.bf16.msra.mxu0 0
        %1475 = vmatprep.subr.bf16.mxu0 0
        %1476 = vmatpush1.bf16.msra.mxu0 0
        %1477 = vmatprep.subr.bf16.mxu0 0
        %1478 = vmatpush1.bf16.msra.mxu0 0
        %1479 = vmatprep.subr.bf16.mxu0 0
        %1480 = vmatpush1.bf16.msra.mxu0 0
        %1481 = vmatprep.subr.bf16.mxu0 0
        %1482 = vmatpush1.bf16.msra.mxu0 %v1465
        %1483 = vmatprep.subr.bf16.mxu0 0
        %1484 = vmatpush2.bf16.msra.mxu0 0
        %1485 = vmatprep.subr.bf16.mxu0 0
        %1486 = vmatpush2.bf16.msra.mxu0 0
        %1487 = vmatprep.subr.bf16.mxu0 0
        %1488 = vmatpush2.bf16.msra.mxu0 0
        %1489 = vmatprep.subr.bf16.mxu0 0
        %1490 = vmatpush2.bf16.msra.mxu0 0
        %1491 = vmatprep.subr.bf16.mxu0 0
        %1492 = vmatpush2.bf16.msra.mxu0 0
        %1493 = vmatprep.subr.bf16.mxu0 0
        %1494 = vmatpush2.bf16.msra.mxu0 0
        %1495 = vmatprep.subr.bf16.mxu0 0
        %1496 = vmatpush2.bf16.msra.mxu0 0
        %1497 = vmatprep.subr.bf16.mxu0 0
        %1498 = vmatpush2.bf16.msra.mxu0 0
        %1499 = vmatprep.mubr.bf16.mxu0 0
        %1500 = vmatmul.mubr.bf16.gmra.mxu0 %v448
        %v1501 = vpop.f32.mrf.mxu0
        %v1502 = vadd.f32 0.0, %v1501
        %v1503 = vpop.f32.mrf.mxu0
        %v1504 = vpop.f32.mrf.mxu0
        %v1505 = vpop.f32.mrf.mxu0
        %1506 = vdwg.mxu0
        %v1508 = vsel %vm399, %v1462, 0
        %1510 = vmatprep.subr.bf16.mxu0 0
        %1511 = vmatpush1.bf16.msra.mxu0 0
        %1512 = vmatprep.subr.bf16.mxu0 0
        %1513 = vmatpush1.bf16.msra.mxu0 0
        %1514 = vmatprep.subr.bf16.mxu0 0
        %1515 = vmatpush1.bf16.msra.mxu0 0
        %1516 = vmatprep.subr.bf16.mxu0 0
        %1517 = vmatpush1.bf16.msra.mxu0 0
        %1518 = vmatprep.subr.bf16.mxu0 0
        %1519 = vmatpush1.bf16.msra.mxu0 0
        %1520 = vmatprep.subr.bf16.mxu0 0
        %1521 = vmatpush1.bf16.msra.mxu0 0
        %1522 = vmatprep.subr.bf16.mxu0 0
        %1523 = vmatpush1.bf16.msra.mxu0 0
        %1524 = vmatprep.subr.bf16.mxu0 0
        %1525 = vmatpush1.bf16.msra.mxu0 %v1508
        %1526 = vmatprep.subr.bf16.mxu0 0
        %1527 = vmatpush2.bf16.msra.mxu0 0
        %1528 = vmatprep.subr.bf16.mxu0 0
        %1529 = vmatpush2.bf16.msra.mxu0 0
        %1530 = vmatprep.subr.bf16.mxu0 0
        %1531 = vmatpush2.bf16.msra.mxu0 0
        %1532 = vmatprep.subr.bf16.mxu0 0
        %1533 = vmatpush2.bf16.msra.mxu0 0
        %1534 = vmatprep.subr.bf16.mxu0 0
        %1535 = vmatpush2.bf16.msra.mxu0 0
        %1536 = vmatprep.subr.bf16.mxu0 0
        %1537 = vmatpush2.bf16.msra.mxu0 0
        %1538 = vmatprep.subr.bf16.mxu0 0
        %1539 = vmatpush2.bf16.msra.mxu0 0
        %1540 = vmatprep.subr.bf16.mxu0 0
        %1541 = vmatpush2.bf16.msra.mxu0 0
        %1542 = vmatprep.mubr.bf16.mxu0 0
        %1543 = vmatmul.mubr.bf16.gmra.mxu0 %v397
        %v1544 = vpop.f32.mrf.mxu0
        %v1545 = vadd.f32 %v1502, %v1544
        %v1546 = vpop.f32.mrf.mxu0
        %v1547 = vpop.f32.mrf.mxu0
        %v1548 = vpop.f32.mrf.mxu0
        %1549 = vdwg.mxu0
        %v1550 = vpack.c.bf16 %v1456, %v1456
        %v1552 = vsel %vm399, %v1550, 0
        %1554 = vmatprep.subr.bf16.mxu0 0
        %1555 = vmatpush1.bf16.msra.mxu0 0
        %1556 = vmatprep.subr.bf16.mxu0 0
        %1557 = vmatpush1.bf16.msra.mxu0 0
        %1558 = vmatprep.subr.bf16.mxu0 0
        %1559 = vmatpush1.bf16.msra.mxu0 0
        %1560 = vmatprep.subr.bf16.mxu0 0
        %1561 = vmatpush1.bf16.msra.mxu0 0
        %1562 = vmatprep.subr.bf16.mxu0 0
        %1563 = vmatpush1.bf16.msra.mxu0 0
        %1564 = vmatprep.subr.bf16.mxu0 0
        %1565 = vmatpush1.bf16.msra.mxu0 0
        %1566 = vmatprep.subr.bf16.mxu0 0
        %1567 = vmatpush1.bf16.msra.mxu0 0
        %1568 = vmatprep.subr.bf16.mxu0 0
        %1569 = vmatpush1.bf16.msra.mxu0 %v1552
        %1570 = vmatprep.subr.bf16.mxu0 0
        %1571 = vmatpush2.bf16.msra.mxu0 0
        %1572 = vmatprep.subr.bf16.mxu0 0
        %1573 = vmatpush2.bf16.msra.mxu0 0
        %1574 = vmatprep.subr.bf16.mxu0 0
        %1575 = vmatpush2.bf16.msra.mxu0 0
        %1576 = vmatprep.subr.bf16.mxu0 0
        %1577 = vmatpush2.bf16.msra.mxu0 0
        %1578 = vmatprep.subr.bf16.mxu0 0
        %1579 = vmatpush2.bf16.msra.mxu0 0
        %1580 = vmatprep.subr.bf16.mxu0 0
        %1581 = vmatpush2.bf16.msra.mxu0 0
        %1582 = vmatprep.subr.bf16.mxu0 0
        %1583 = vmatpush2.bf16.msra.mxu0 0
        %1584 = vmatprep.subr.bf16.mxu0 0
        %1585 = vmatpush2.bf16.msra.mxu0 0
        %1586 = vmatprep.mubr.bf16.mxu0 0
        %1587 = vmatmul.mubr.bf16.gmra.mxu0 %v499
        %v1588 = vpop.f32.mrf.mxu0
        %v1589 = vadd.f32 0.0, %v1588
        %v1590 = vpop.f32.mrf.mxu0
        %v1591 = vpop.f32.mrf.mxu0
        %v1592 = vpop.f32.mrf.mxu0
        %1593 = vdwg.mxu0
        %v1594 = vadd.f32 %v1545, %v1589
        %v1595 = vpack.c.bf16 %v1417, %v1417
        %v1596 = vpack.c.bf16 %v1419, %v1419
        %v1598 = vsel %vm399, %v1596, 0
        %1600 = vmatprep.subr.bf16.mxu0 0
        %1601 = vmatpush1.bf16.msra.mxu0 0
        %1602 = vmatprep.subr.bf16.mxu0 0
        %1603 = vmatpush1.bf16.msra.mxu0 0
        %1604 = vmatprep.subr.bf16.mxu0 0
        %1605 = vmatpush1.bf16.msra.mxu0 0
        %1606 = vmatprep.subr.bf16.mxu0 0
        %1607 = vmatpush1.bf16.msra.mxu0 0
        %1608 = vmatprep.subr.bf16.mxu0 0
        %1609 = vmatpush1.bf16.msra.mxu0 0
        %1610 = vmatprep.subr.bf16.mxu0 0
        %1611 = vmatpush1.bf16.msra.mxu0 0
        %1612 = vmatprep.subr.bf16.mxu0 0
        %1613 = vmatpush1.bf16.msra.mxu0 0
        %1614 = vmatprep.subr.bf16.mxu0 0
        %1615 = vmatpush1.bf16.msra.mxu0 %v1598
        %1616 = vmatprep.subr.bf16.mxu0 0
        %1617 = vmatpush2.bf16.msra.mxu0 0
        %1618 = vmatprep.subr.bf16.mxu0 0
        %1619 = vmatpush2.bf16.msra.mxu0 0
        %1620 = vmatprep.subr.bf16.mxu0 0
        %1621 = vmatpush2.bf16.msra.mxu0 0
        %1622 = vmatprep.subr.bf16.mxu0 0
        %1623 = vmatpush2.bf16.msra.mxu0 0
        %1624 = vmatprep.subr.bf16.mxu0 0
        %1625 = vmatpush2.bf16.msra.mxu0 0
        %1626 = vmatprep.subr.bf16.mxu0 0
        %1627 = vmatpush2.bf16.msra.mxu0 0
        %1628 = vmatprep.subr.bf16.mxu0 0
        %1629 = vmatpush2.bf16.msra.mxu0 0
        %1630 = vmatprep.subr.bf16.mxu0 0
        %1631 = vmatpush2.bf16.msra.mxu0 0
        %1632 = vmatprep.mubr.bf16.mxu0 0
        %1633 = vmatmul.mubr.bf16.gmra.mxu0 %v600
        %v1634 = vpop.f32.mrf.mxu0
        %v1635 = vadd.f32 0.0, %v1634
        %v1636 = vpop.f32.mrf.mxu0
        %v1637 = vpop.f32.mrf.mxu0
        %v1638 = vpop.f32.mrf.mxu0
        %1639 = vdwg.mxu0
        %v1641 = vsel %vm399, %v1595, 0
        %1643 = vmatprep.subr.bf16.mxu0 0
        %1644 = vmatpush1.bf16.msra.mxu0 0
        %1645 = vmatprep.subr.bf16.mxu0 0
        %1646 = vmatpush1.bf16.msra.mxu0 0
        %1647 = vmatprep.subr.bf16.mxu0 0
        %1648 = vmatpush1.bf16.msra.mxu0 0
        %1649 = vmatprep.subr.bf16.mxu0 0
        %1650 = vmatpush1.bf16.msra.mxu0 0
        %1651 = vmatprep.subr.bf16.mxu0 0
        %1652 = vmatpush1.bf16.msra.mxu0 0
        %1653 = vmatprep.subr.bf16.mxu0 0
        %1654 = vmatpush1.bf16.msra.mxu0 0
        %1655 = vmatprep.subr.bf16.mxu0 0
        %1656 = vmatpush1.bf16.msra.mxu0 0
        %1657 = vmatprep.subr.bf16.mxu0 0
        %1658 = vmatpush1.bf16.msra.mxu0 %v1641
        %1659 = vmatprep.subr.bf16.mxu0 0
        %1660 = vmatpush2.bf16.msra.mxu0 0
        %1661 = vmatprep.subr.bf16.mxu0 0
        %1662 = vmatpush2.bf16.msra.mxu0 0
        %1663 = vmatprep.subr.bf16.mxu0 0
        %1664 = vmatpush2.bf16.msra.mxu0 0
        %1665 = vmatprep.subr.bf16.mxu0 0
        %1666 = vmatpush2.bf16.msra.mxu0 0
        %1667 = vmatprep.subr.bf16.mxu0 0
        %1668 = vmatpush2.bf16.msra.mxu0 0
        %1669 = vmatprep.subr.bf16.mxu0 0
        %1670 = vmatpush2.bf16.msra.mxu0 0
        %1671 = vmatprep.subr.bf16.mxu0 0
        %1672 = vmatpush2.bf16.msra.mxu0 0
        %1673 = vmatprep.subr.bf16.mxu0 0
        %1674 = vmatpush2.bf16.msra.mxu0 0
        %1675 = vmatprep.mubr.bf16.mxu0 0
        %1676 = vmatmul.mubr.bf16.gmra.mxu0 %v550
        %v1677 = vpop.f32.mrf.mxu0
        %v1678 = vadd.f32 %v1635, %v1677
        %v1679 = vpop.f32.mrf.mxu0
        %v1680 = vpop.f32.mrf.mxu0
        %v1681 = vpop.f32.mrf.mxu0
        %1682 = vdwg.mxu0
        %v1683 = vpack.c.bf16 %v1459, %v1459
        %v1685 = vsel %vm399, %v1683, 0
        %1687 = vmatprep.subr.bf16.mxu0 0
        %1688 = vmatpush1.bf16.msra.mxu0 0
        %1689 = vmatprep.subr.bf16.mxu0 0
        %1690 = vmatpush1.bf16.msra.mxu0 0
        %1691 = vmatprep.subr.bf16.mxu0 0
        %1692 = vmatpush1.bf16.msra.mxu0 0
        %1693 = vmatprep.subr.bf16.mxu0 0
        %1694 = vmatpush1.bf16.msra.mxu0 0
        %1695 = vmatprep.subr.bf16.mxu0 0
        %1696 = vmatpush1.bf16.msra.mxu0 0
        %1697 = vmatprep.subr.bf16.mxu0 0
        %1698 = vmatpush1.bf16.msra.mxu0 0
        %1699 = vmatprep.subr.bf16.mxu0 0
        %1700 = vmatpush1.bf16.msra.mxu0 0
        %1701 = vmatprep.subr.bf16.mxu0 0
        %1702 = vmatpush1.bf16.msra.mxu0 %v1685
        %1703 = vmatprep.subr.bf16.mxu0 0
        %1704 = vmatpush2.bf16.msra.mxu0 0
        %1705 = vmatprep.subr.bf16.mxu0 0
        %1706 = vmatpush2.bf16.msra.mxu0 0
        %1707 = vmatprep.subr.bf16.mxu0 0
        %1708 = vmatpush2.bf16.msra.mxu0 0
        %1709 = vmatprep.subr.bf16.mxu0 0
        %1710 = vmatpush2.bf16.msra.mxu0 0
        %1711 = vmatprep.subr.bf16.mxu0 0
        %1712 = vmatpush2.bf16.msra.mxu0 0
        %1713 = vmatprep.subr.bf16.mxu0 0
        %1714 = vmatpush2.bf16.msra.mxu0 0
        %1715 = vmatprep.subr.bf16.mxu0 0
        %1716 = vmatpush2.bf16.msra.mxu0 0
        %1717 = vmatprep.subr.bf16.mxu0 0
        %1718 = vmatpush2.bf16.msra.mxu0 0
        %1719 = vmatprep.mubr.bf16.mxu0 0
        %1720 = vmatmul.mubr.bf16.gmra.mxu0 %v651
        %v1721 = vpop.f32.mrf.mxu0
        %v1722 = vadd.f32 0.0, %v1721
        %v1723 = vpop.f32.mrf.mxu0
        %v1724 = vpop.f32.mrf.mxu0
        %v1725 = vpop.f32.mrf.mxu0
        %1726 = vdwg.mxu0
        %v1727 = vadd.f32 %v1678, %v1722
        %1728 = vst [vmem:[%s266] sm:$0xff] %v1594
        %1729 = vst [vmem:[%s266 + $0x8] sm:$0xff] %v1727
        %s1730 = sand.u32 %s144, 1
        %s1731 = scalar_lea.sflag [#allocation4], %s1730
        %s1732 = sand.u32 %s144, 1
        %s1733 = smul.addr %s1732, 16
        %s1734 = scalar_lea.vmem [#allocation7], %s1733
        // Predicated region
        $region49: #{_lambda_.1} parent=39 // pred_check
          %p1735 = pneg %p154
        $region50: #{_lambda_.1} parent=39 // pred_check_branch
          %1737 = sbr.rel (%p1735) target = $region52
        $region51: #{_lambda_.1} parent=39 // pred_region
          %s1738 = smul.u32 2, %s21
          %s1740 = ssub.s32 256, 256
          %1741 = vsyncadd %s1731, %s1740
          %s1742 = smul.addr %s1738, 128
          %s1743 = scalar_lea.hbm %s5, %s1742
          %s1744 = sshll.u32 %s1734, 4
          %s1745 = int_to_ptr.vmem [resolvable:$true] %s1744
          %1750 = dma.vmem_to_hbm [thread:$0]  %s1745, 256, %s1743, %s1731, 128, 128, 8
        $region52: #{_lambda_.1} parent=39 // pred_fallthru
          _
      $region40: #{_lambda_.1} parent=5 // pred_fallthru
        _
      %p1751 = scmp.le.s32.totalorder 2, %s16
      // Predicated region
      $region53: #{_lambda_.1} parent=5 // pred_check
        %p1752 = pneg %p1751
      $region54: #{_lambda_.1} parent=5 // pred_check_branch
        %1754 = sbr.rel (%p1752) target = $region56
      $region55: #{_lambda_.1} parent=5 // pred_region
        %s1755 = ssub.s32 %s16, 2
        // Predicated region
        $region57: #{_lambda_.1} parent=55 // pred_check
          %p1756 = pneg %p160
        $region58: #{_lambda_.1} parent=55 // pred_check_branch
          %1758 = sbr.rel (%p1756) target = $region60
        $region59: #{_lambda_.1} parent=55 // pred_region
          %s1759 = sand.u32 %s145, 1
          %s1760 = scalar_lea.sflag [#allocation4], %s1759
          %s1761 = sand.u32 %s145, 1
          %s1762 = smul.addr %s1761, 16
          %s1763 = scalar_lea.vmem [#allocation7], %s1762
          %1764 = dma.done %s1760, 256
        $region60: #{_lambda_.1} parent=55 // pred_fallthru
          _
      $region56: #{_lambda_.1} parent=5 // pred_fallthru
        _
    $region6: #{_lambda_.1} parent=1 // loop_footer
      %s20 = sadd.s32 1, %s16
    $region7: #{_lambda_.1} parent=1 // loop_footer_branch
      %15 = sbr.rel target = $region3
    $region8: #{_lambda_.1} parent=1 // loop_exit
      _
    %1765 = vsyncpa [#allocation3], 1
    %s1766 = scalar_lea.sflag [#allocation3], 1
    %1767 = vsyncpa %s1766, 1
    %1768 = vsyncpa [#allocation6], 1
    %1769 = vsyncpa [#allocation4], 1
    %s1770 = scalar_lea.sflag [#allocation4], 1
    %1771 = vsyncpa %s1770, 1

</llo_original>
